<compile_context>
chip_gen: v6e
topology: v6e:2x2x1
jax: 0.10.0
libtpu: 0.0.40
codegen_flags: <defaults>
</compile_context>

<pallas_src>
import math
from functools import partial

import jax
import jax.numpy as jnp
from jax import lax
from jax.experimental import pallas as pl
from jax.experimental.pallas import tpu as pltpu

WINDOW = 3
NEG_INF = -1e30


def _round_up(n, m=128):
    return ((n + m - 1) // m) * m


def _ln(x, g, b, eps=1e-5):
    mean = jnp.mean(x, axis=-1, keepdims=True)
    var = jnp.mean((x - mean) ** 2, axis=-1, keepdims=True)
    return (x - mean) * lax.rsqrt(var + eps) * g + b


# --------------------------- fused block kernel -----------------------------

def _block_kernel(x_ref, bias_ref,
                  ln1g_ref, ln1b_ref, wqkv_ref, bqkv_ref, wo_ref, bo_ref,
                  ln2g_ref, ln2b_ref, w1_ref, b1_ref, w2_ref, b2_ref,
                  y_ref, attn_ref, *, n_head, head_dim, d_model, scale):
    x = x_ref[...].astype(jnp.float32)          # (T, D) residual stream (VMEM)
    bias = bias_ref[...]                        # (T, T) additive mask

    # ---- self-attention sublayer ----
    xn = _ln(x, ln1g_ref[...], ln1b_ref[...])
    # single fused QKV matmul; weight is lane-padded to 128 output columns.
    qkv = jnp.dot(xn, wqkv_ref[...],
                  preferred_element_type=jnp.float32) + bqkv_ref[...]

    ctx_heads = []
    for h in range(n_head):
        lo = h * head_dim
        q = qkv[:, lo:lo + head_dim]
        k = qkv[:, d_model + lo:d_model + lo + head_dim]
        v = qkv[:, 2 * d_model + lo:2 * d_model + lo + head_dim]
        # q @ k^T via dot_general contracting last dims (no explicit transpose).
        s = lax.dot_general(q, k, (((1,), (1,)), ((), ())),
                            preferred_element_type=jnp.float32) * scale + bias
        m = jnp.max(s, axis=-1, keepdims=True)
        p = jnp.exp(s - m)
        p = p * pl.reciprocal(jnp.sum(p, axis=-1, keepdims=True), approx=True)
        attn_ref[h, :, :] = p.astype(attn_ref.dtype)
        ctx_heads.append(jnp.dot(p, v, preferred_element_type=jnp.float32))
    ctx = jnp.concatenate(ctx_heads, axis=-1)   # (T, D) — heads merged in-kernel

    x = x + jnp.dot(ctx, wo_ref[...],
                    preferred_element_type=jnp.float32) + bo_ref[...]

    # ---- feed-forward sublayer ----
    xn2 = _ln(x, ln2g_ref[...], ln2b_ref[...])
    h1 = jnp.dot(xn2, w1_ref[...], preferred_element_type=jnp.float32) + b1_ref[...]
    h1 = jnp.maximum(h1, 0.0)
    x = x + jnp.dot(h1, w2_ref[...],
                    preferred_element_type=jnp.float32) + b2_ref[...]

    y_ref[...] = x.astype(y_ref.dtype)


def fused_block(x, bias, blk, n_head):
    B, T, D = x.shape
    hd = D // n_head
    scale = 1.0 / math.sqrt(hd)
    qkvp = blk["wqkv"].shape[1]
    ffp = blk["w1"].shape[1]

    def wspec(shape):
        return pl.BlockSpec(shape, lambda b: tuple(0 for _ in shape))

    kernel = partial(_block_kernel, n_head=n_head, head_dim=hd,
                     d_model=D, scale=scale)
    y, attn = pl.pallas_call(
        kernel,
        out_shape=(jax.ShapeDtypeStruct((B, T, D), x.dtype),
                   jax.ShapeDtypeStruct((B, n_head, T, T), jnp.float32)),
        grid=(B,),
        in_specs=[
            pl.BlockSpec((None, T, D), lambda b: (b, 0, 0)),   # x (per batch)
            pl.BlockSpec((T, T), lambda b: (0, 0)),            # additive mask
            wspec((1, D)), wspec((1, D)),                      # ln1 g, b
            wspec((D, qkvp)), wspec((1, qkvp)),                # fused QKV w, b
            wspec((D, D)), wspec((1, D)),                      # wo, bo
            wspec((1, D)), wspec((1, D)),                      # ln2 g, b
            wspec((D, ffp)), wspec((1, ffp)),                  # w1, b1 (padded)
            wspec((ffp, D)), wspec((1, D)),                    # w2, b2
        ],
        out_specs=(pl.BlockSpec((None, T, D), lambda b: (b, 0, 0)),
                   pl.BlockSpec((None, n_head, T, T), lambda b: (b, 0, 0, 0))),
        compiler_params=pltpu.CompilerParams(
            dimension_semantics=("parallel",)),
    )(x, bias,
      blk["ln1_g"].reshape(1, D), blk["ln1_b"].reshape(1, D),
      blk["wqkv"], blk["bqkv"].reshape(1, qkvp),
      blk["wo"], blk["bo"].reshape(1, D),
      blk["ln2_g"].reshape(1, D), blk["ln2_b"].reshape(1, D),
      blk["w1"], blk["b1"].reshape(1, ffp),
      blk["w2"], blk["b2"].reshape(1, D))
    return y, attn


# ----------------------- fused final LN + LM head ---------------------------

def _head_kernel(x_ref, g_ref, b_ref, w_ref, bb_ref, o_ref):
    x = x_ref[...].astype(jnp.float32)
    xn = _ln(x, g_ref[...], b_ref[...])
    o_ref[...] = (jnp.dot(xn, w_ref[...], preferred_element_type=jnp.float32)
                  + bb_ref[...]).astype(o_ref.dtype)


def lnf_lm_head(x2d, g, b, w, bias):
    N, D = x2d.shape
    VP = w.shape[1]
    return pl.pallas_call(
        _head_kernel,
        out_shape=jax.ShapeDtypeStruct((N, VP), x2d.dtype),
        grid=(1,),
        in_specs=[pl.BlockSpec((N, D), lambda i: (0, 0)),
                  pl.BlockSpec((1, D), lambda i: (0, 0)),
                  pl.BlockSpec((1, D), lambda i: (0, 0)),
                  pl.BlockSpec((D, VP), lambda i: (0, 0)),
                  pl.BlockSpec((1, VP), lambda i: (0, 0))],
        out_specs=pl.BlockSpec((N, VP), lambda i: (0, 0)),
    )(x2d, g.reshape(1, D), b.reshape(1, D), w, bias.reshape(1, VP))


# ----------------------------- parameter setup -------------------------------

def _pad_cols(a, target):
    pad = target - a.shape[1]
    return jnp.pad(a, ((0, 0), (0, pad))) if pad > 0 else a


def _pad_rows(a, target):
    pad = target - a.shape[0]
    return jnp.pad(a, ((0, pad), (0, 0))) if pad > 0 else a


def init_params(key, vocab_size, n_embed, n_head, n_layer, block_size,
                ff_hidden=100):
    def nrm(k, shape):
        return 0.02 * jax.random.normal(k, shape, dtype=jnp.float32)

    keys = jax.random.split(key, 3 + 4 * n_layer)
    ki = iter(keys)
    ffp = _round_up(ff_hidden)
    vocp = _round_up(vocab_size)
    qkvp = _round_up(3 * n_embed)

    params = {
        "n_head": n_head,
        "vocab_size": vocab_size,
        "tok_emb": nrm(next(ki), (vocab_size, n_embed)),
        "pos_emb": nrm(next(ki), (block_size, n_embed)),
        "lnf_g": jnp.ones((n_embed,), jnp.float32),
        "lnf_b": jnp.zeros((n_embed,), jnp.float32),
        "blocks": [],
    }
    for _ in range(n_layer):
        blk = {
            "ln1_g": jnp.ones((n_embed,), jnp.float32),
            "ln1_b": jnp.zeros((n_embed,), jnp.float32),
            "ln2_g": jnp.ones((n_embed,), jnp.float32),
            "ln2_b": jnp.zeros((n_embed,), jnp.float32),
            # fused Q|K|V weight, zero-padded to 128 output lanes
            "wqkv": _pad_cols(nrm(next(ki), (n_embed, 3 * n_embed)), qkvp),
            "bqkv": jnp.zeros((qkvp,), jnp.float32),
            "wo": nrm(next(ki), (n_embed, n_embed)),
            "bo": jnp.zeros((n_embed,), jnp.float32),
            # FF hidden zero-padded 100 -> 128 (exact: zero cols / zero rows)
            "w1": _pad_cols(nrm(next(ki), (n_embed, ff_hidden)), ffp),
            "b1": jnp.zeros((ffp,), jnp.float32),
            "w2": _pad_rows(nrm(next(ki), (ff_hidden, n_embed)), ffp),
            "b2": jnp.zeros((n_embed,), jnp.float32),
        }
        params["blocks"].append(blk)
    # LM head zero-padded vocab -> 128 lanes; padding sliced off in forward.
    params["lm_w"] = _pad_cols(nrm(next(ki), (n_embed, vocab_size)), vocp)
    params["lm_b"] = jnp.zeros((vocp,), jnp.float32)
    return params


# ------------------------------- forward pass --------------------------------

def decoder_forward(params, tokens, window=WINDOW):
    B, T = tokens.shape
    D = params["tok_emb"].shape[1]
    V = params["vocab_size"]
    H = params["n_head"]

    # Embedding lookups (gather) kept as plain-JAX glue.
    x = params["tok_emb"][tokens] + params["pos_emb"][jnp.arange(T)][None, :, :]

    # Causal + sliding-window mask as an additive bias (0 keep / -1e30 drop).
    i = jnp.arange(T)[:, None]
    j = jnp.arange(T)[None, :]
    keep = (j <= i) & ((i - j) < window)
    bias = jnp.where(keep, 0.0, NEG_INF).astype(jnp.float32)

    attn_maps = []
    for blk in params["blocks"]:
        x, attn = fused_block(x, bias, blk, H)
        attn_maps.append(attn)                       # (B, H, T, T)

    logits_pad = lnf_lm_head(x.reshape(B * T, D), params["lnf_g"],
                             params["lnf_b"], params["lm_w"], params["lm_b"])
    logits = logits_pad[:, :V].reshape(B, T, V)
    return logits, attn_maps


# ----------------------------------- main -------------------------------------

if __name__ == "__main__":
    vocab_size, n_embed, n_head, n_layer, block_size = 64, 32, 4, 2, 8
    B, T = 2, 8

    key = jax.random.PRNGKey(0)
    pkey, tkey = jax.random.split(key)
    params = init_params(pkey, vocab_size, n_embed, n_head, n_layer, block_size)
    tokens = jax.random.randint(tkey, (B, T), 0, vocab_size, dtype=jnp.int32)

    logits, attn_maps = decoder_forward(params, tokens)
    jax.block_until_ready(logits)
    for am in attn_maps:
        jax.block_until_ready(am)

    assert logits.shape == (B, T, vocab_size)
    assert all(am.shape == (B, n_head, T, T) for am in attn_maps)
    assert bool(jnp.all(jnp.isfinite(logits)))
    print("KERNEL_OK")
</pallas_src>

<mosaic_0001>
module attributes {stable_mosaic.version = 11 : i64} {
  func.func @_block_kernel(%arg0: i32, %arg1: memref<1x8x32xf32, #tpu.memory_space<vmem>>, %arg2: memref<8x8xf32, #tpu.memory_space<vmem>>, %arg3: memref<1x32xf32, #tpu.memory_space<vmem>>, %arg4: memref<1x32xf32, #tpu.memory_space<vmem>>, %arg5: memref<32x128xf32, #tpu.memory_space<vmem>>, %arg6: memref<1x128xf32, #tpu.memory_space<vmem>>, %arg7: memref<32x32xf32, #tpu.memory_space<vmem>>, %arg8: memref<1x32xf32, #tpu.memory_space<vmem>>, %arg9: memref<1x32xf32, #tpu.memory_space<vmem>>, %arg10: memref<1x32xf32, #tpu.memory_space<vmem>>, %arg11: memref<32x128xf32, #tpu.memory_space<vmem>>, %arg12: memref<1x128xf32, #tpu.memory_space<vmem>>, %arg13: memref<128x32xf32, #tpu.memory_space<vmem>>, %arg14: memref<1x32xf32, #tpu.memory_space<vmem>>, %arg15: memref<1x8x32xf32, #tpu.memory_space<vmem>>, %arg16: memref<1x4x8x8xf32, #tpu.memory_space<vmem>>) attributes {dimension_semantics = [#tpu.dimension_semantics<parallel>], iteration_bounds = array<i64: 2>, scalar_prefetch = 0 : i64, scratch_operands = 0 : i64, tpu.core_type = #tpu.core_type<tc>, window_params = [{transform_indices = @transform_0, window_bounds = array<i64: 1, 8, 32>}, {pipeline_mode = #tpu.pipeline_mode<synchronous>, transform_indices = @transform_1, window_bounds = array<i64: 8, 8>}, {pipeline_mode = #tpu.pipeline_mode<synchronous>, transform_indices = @transform_2, window_bounds = array<i64: 1, 32>}, {pipeline_mode = #tpu.pipeline_mode<synchronous>, transform_indices = @transform_3, window_bounds = array<i64: 1, 32>}, {pipeline_mode = #tpu.pipeline_mode<synchronous>, transform_indices = @transform_4, window_bounds = array<i64: 32, 128>}, {pipeline_mode = #tpu.pipeline_mode<synchronous>, transform_indices = @transform_5, window_bounds = array<i64: 1, 128>}, {pipeline_mode = #tpu.pipeline_mode<synchronous>, transform_indices = @transform_6, window_bounds = array<i64: 32, 32>}, {pipeline_mode = #tpu.pipeline_mode<synchronous>, transform_indices = @transform_7, window_bounds = array<i64: 1, 32>}, {pipeline_mode = #tpu.pipeline_mode<synchronous>, transform_indices = @transform_8, window_bounds = array<i64: 1, 32>}, {pipeline_mode = #tpu.pipeline_mode<synchronous>, transform_indices = @transform_9, window_bounds = array<i64: 1, 32>}, {pipeline_mode = #tpu.pipeline_mode<synchronous>, transform_indices = @transform_10, window_bounds = array<i64: 32, 128>}, {pipeline_mode = #tpu.pipeline_mode<synchronous>, transform_indices = @transform_11, window_bounds = array<i64: 1, 128>}, {pipeline_mode = #tpu.pipeline_mode<synchronous>, transform_indices = @transform_12, window_bounds = array<i64: 128, 32>}, {pipeline_mode = #tpu.pipeline_mode<synchronous>, transform_indices = @transform_13, window_bounds = array<i64: 1, 32>}, {transform_indices = @transform_14, window_bounds = array<i64: 1, 8, 32>}, {transform_indices = @transform_15, window_bounds = array<i64: 1, 4, 8, 8>}]} {
    %c0 = arith.constant 0 : index
    %c0_0 = arith.constant 0 : index
    %c0_1 = arith.constant 0 : index
    %0 = vector.load %arg1[%c0, %c0_0, %c0_1] : memref<1x8x32xf32, #tpu.memory_space<vmem>>, vector<1x8x32xf32>
    %1 = vector.shape_cast %0 : vector<1x8x32xf32> to vector<8x32xf32>
    %c0_2 = arith.constant 0 : index
    %c0_3 = arith.constant 0 : index
    %2 = vector.load %arg2[%c0_2, %c0_3] : memref<8x8xf32, #tpu.memory_space<vmem>>, vector<8x8xf32>
    %c0_4 = arith.constant 0 : index
    %c0_5 = arith.constant 0 : index
    %3 = vector.load %arg3[%c0_4, %c0_5] : memref<1x32xf32, #tpu.memory_space<vmem>>, vector<1x32xf32>
    %c0_6 = arith.constant 0 : index
    %c0_7 = arith.constant 0 : index
    %4 = vector.load %arg4[%c0_6, %c0_7] : memref<1x32xf32, #tpu.memory_space<vmem>>, vector<1x32xf32>
    %cst = arith.constant dense<0.000000e+00> : vector<8xf32>
    %5 = vector.multi_reduction <add>, %1, %cst [1] : vector<8x32xf32> to vector<8xf32>
    %6 = vector.shape_cast %5 : vector<8xf32> to vector<8x1xf32>
    %cst_8 = arith.constant 3.200000e+01 : f32
    %7 = vector.broadcast %cst_8 : f32 to vector<8x1xf32>
    %8 = arith.divf %6, %7 : vector<8x1xf32>
    %9 = vector.broadcast %8 : vector<8x1xf32> to vector<8x32xf32>
    %10 = arith.subf %1, %9 : vector<8x32xf32>
    %11 = arith.mulf %10, %10 : vector<8x32xf32>
    %cst_9 = arith.constant dense<0.000000e+00> : vector<8xf32>
    %12 = vector.multi_reduction <add>, %11, %cst_9 [1] : vector<8x32xf32> to vector<8xf32>
    %13 = vector.shape_cast %12 : vector<8xf32> to vector<8x1xf32>
    %cst_10 = arith.constant 3.200000e+01 : f32
    %14 = vector.broadcast %cst_10 : f32 to vector<8x1xf32>
    %15 = arith.divf %13, %14 : vector<8x1xf32>
    %16 = vector.broadcast %8 : vector<8x1xf32> to vector<8x32xf32>
    %17 = arith.subf %1, %16 : vector<8x32xf32>
    %cst_11 = arith.constant 9.99999974E-6 : f32
    %18 = vector.broadcast %cst_11 : f32 to vector<8x1xf32>
    %19 = arith.addf %15, %18 : vector<8x1xf32>
    %20 = math.rsqrt %19 : vector<8x1xf32>
    %21 = vector.broadcast %20 : vector<8x1xf32> to vector<8x32xf32>
    %22 = arith.mulf %17, %21 : vector<8x32xf32>
    %23 = vector.broadcast %3 : vector<1x32xf32> to vector<8x32xf32>
    %24 = arith.mulf %22, %23 : vector<8x32xf32>
    %25 = vector.broadcast %4 : vector<1x32xf32> to vector<8x32xf32>
    %26 = arith.addf %24, %25 : vector<8x32xf32>
    %c0_12 = arith.constant 0 : index
    %c0_13 = arith.constant 0 : index
    %27 = vector.load %arg5[%c0_12, %c0_13] : memref<32x128xf32, #tpu.memory_space<vmem>>, vector<32x128xf32>
    %cst_14 = arith.constant dense<0.000000e+00> : vector<8x128xf32>
    %28 = tpu.matmul %26, %27, %cst_14 {dimension_numbers = #tpu.dot_dimension_numbers<[1], [0], [0], [1], [0, 0, 1, 1], [], []>} : vector<8x32xf32>, vector<32x128xf32>, vector<8x128xf32> -> vector<8x128xf32>
    %c0_15 = arith.constant 0 : index
    %c0_16 = arith.constant 0 : index
    %29 = vector.load %arg6[%c0_15, %c0_16] : memref<1x128xf32, #tpu.memory_space<vmem>>, vector<1x128xf32>
    %30 = vector.broadcast %29 : vector<1x128xf32> to vector<8x128xf32>
    %31 = arith.addf %28, %30 : vector<8x128xf32>
    %32 = vector.extract_strided_slice %31 {offsets = [0, 0], sizes = [8, 8], strides = [1, 1]} : vector<8x128xf32> to vector<8x8xf32>
    %33 = vector.extract_strided_slice %31 {offsets = [0, 32], sizes = [8, 8], strides = [1, 1]} : vector<8x128xf32> to vector<8x8xf32>
    %34 = vector.extract_strided_slice %31 {offsets = [0, 64], sizes = [8, 8], strides = [1, 1]} : vector<8x128xf32> to vector<8x8xf32>
    %cst_17 = arith.constant dense<0.000000e+00> : vector<8x8xf32>
    %35 = tpu.matmul %32, %33, %cst_17 {dimension_numbers = #tpu.dot_dimension_numbers<[1], [1], [0], [0], [0, 0, 1, 0], [], []>} : vector<8x8xf32>, vector<8x8xf32>, vector<8x8xf32> -> vector<8x8xf32>
    %cst_18 = arith.constant 0.353553385 : f32
    %36 = vector.broadcast %cst_18 : f32 to vector<8x8xf32>
    %37 = arith.mulf %35, %36 : vector<8x8xf32>
    %38 = arith.addf %37, %2 : vector<8x8xf32>
    %cst_19 = arith.constant dense<0xFF800000> : vector<8xf32>
    %39 = vector.multi_reduction <maximumf>, %38, %cst_19 [1] : vector<8x8xf32> to vector<8xf32>
    %40 = vector.shape_cast %39 : vector<8xf32> to vector<8x1xf32>
    %41 = vector.broadcast %40 : vector<8x1xf32> to vector<8x8xf32>
    %42 = arith.subf %38, %41 : vector<8x8xf32>
    %43 = math.exp %42 : vector<8x8xf32>
    %cst_20 = arith.constant dense<0.000000e+00> : vector<8xf32>
    %44 = vector.multi_reduction <add>, %43, %cst_20 [1] : vector<8x8xf32> to vector<8xf32>
    %45 = vector.shape_cast %44 : vector<8xf32> to vector<8x1xf32>
    %46 = tpu.reciprocal %45 {approx = true} : vector<8x1xf32> -> vector<8x1xf32>
    %47 = vector.broadcast %46 : vector<8x1xf32> to vector<8x8xf32>
    %48 = arith.mulf %43, %47 : vector<8x8xf32>
    %c0_21 = arith.constant 0 : index
    %c0_22 = arith.constant 0 : index
    %c0_23 = arith.constant 0 : index
    %c0_24 = arith.constant 0 : index
    %49 = vector.load %arg16[%c0_21, %c0_22, %c0_23, %c0_24] : memref<1x4x8x8xf32, #tpu.memory_space<vmem>>, vector<1x1x8x8xf32>
    %50 = vector.shape_cast %49 : vector<1x1x8x8xf32> to vector<8x8xf32>
    %51 = vector.shape_cast %48 : vector<8x8xf32> to vector<1x1x8x8xf32>
    tpu.vector_store %arg16[%c0_21, %c0_22, %c0_23, %c0_24], %51 {strides = array<i32>} : memref<1x4x8x8xf32, #tpu.memory_space<vmem>>, vector<1x1x8x8xf32>,
    %cst_25 = arith.constant dense<0.000000e+00> : vector<8x8xf32>
    %52 = tpu.matmul %48, %34, %cst_25 {dimension_numbers = #tpu.dot_dimension_numbers<[1], [0], [0], [1], [0, 0, 1, 1], [], []>} : vector<8x8xf32>, vector<8x8xf32>, vector<8x8xf32> -> vector<8x8xf32>
    %53 = vector.extract_strided_slice %31 {offsets = [0, 8], sizes = [8, 8], strides = [1, 1]} : vector<8x128xf32> to vector<8x8xf32>
    %54 = vector.extract_strided_slice %31 {offsets = [0, 40], sizes = [8, 8], strides = [1, 1]} : vector<8x128xf32> to vector<8x8xf32>
    %55 = vector.extract_strided_slice %31 {offsets = [0, 72], sizes = [8, 8], strides = [1, 1]} : vector<8x128xf32> to vector<8x8xf32>
    %cst_26 = arith.constant dense<0.000000e+00> : vector<8x8xf32>
    %56 = tpu.matmul %53, %54, %cst_26 {dimension_numbers = #tpu.dot_dimension_numbers<[1], [1], [0], [0], [0, 0, 1, 0], [], []>} : vector<8x8xf32>, vector<8x8xf32>, vector<8x8xf32> -> vector<8x8xf32>
    %cst_27 = arith.constant 0.353553385 : f32
    %57 = vector.broadcast %cst_27 : f32 to vector<8x8xf32>
    %58 = arith.mulf %56, %57 : vector<8x8xf32>
    %59 = arith.addf %58, %2 : vector<8x8xf32>
    %cst_28 = arith.constant dense<0xFF800000> : vector<8xf32>
    %60 = vector.multi_reduction <maximumf>, %59, %cst_28 [1] : vector<8x8xf32> to vector<8xf32>
    %61 = vector.shape_cast %60 : vector<8xf32> to vector<8x1xf32>
    %62 = vector.broadcast %61 : vector<8x1xf32> to vector<8x8xf32>
    %63 = arith.subf %59, %62 : vector<8x8xf32>
    %64 = math.exp %63 : vector<8x8xf32>
    %cst_29 = arith.constant dense<0.000000e+00> : vector<8xf32>
    %65 = vector.multi_reduction <add>, %64, %cst_29 [1] : vector<8x8xf32> to vector<8xf32>
    %66 = vector.shape_cast %65 : vector<8xf32> to vector<8x1xf32>
    %67 = tpu.reciprocal %66 {approx = true} : vector<8x1xf32> -> vector<8x1xf32>
    %68 = vector.broadcast %67 : vector<8x1xf32> to vector<8x8xf32>
    %69 = arith.mulf %64, %68 : vector<8x8xf32>
    %c0_30 = arith.constant 0 : index
    %c1 = arith.constant 1 : index
    %c0_31 = arith.constant 0 : index
    %c0_32 = arith.constant 0 : index
    %70 = vector.load %arg16[%c0_30, %c1, %c0_31, %c0_32] : memref<1x4x8x8xf32, #tpu.memory_space<vmem>>, vector<1x1x8x8xf32>
    %71 = vector.shape_cast %70 : vector<1x1x8x8xf32> to vector<8x8xf32>
    %72 = vector.shape_cast %69 : vector<8x8xf32> to vector<1x1x8x8xf32>
    tpu.vector_store %arg16[%c0_30, %c1, %c0_31, %c0_32], %72 {strides = array<i32>} : memref<1x4x8x8xf32, #tpu.memory_space<vmem>>, vector<1x1x8x8xf32>,
    %cst_33 = arith.constant dense<0.000000e+00> : vector<8x8xf32>
    %73 = tpu.matmul %69, %55, %cst_33 {dimension_numbers = #tpu.dot_dimension_numbers<[1], [0], [0], [1], [0, 0, 1, 1], [], []>} : vector<8x8xf32>, vector<8x8xf32>, vector<8x8xf32> -> vector<8x8xf32>
    %74 = vector.extract_strided_slice %31 {offsets = [0, 16], sizes = [8, 8], strides = [1, 1]} : vector<8x128xf32> to vector<8x8xf32>
    %75 = vector.extract_strided_slice %31 {offsets = [0, 48], sizes = [8, 8], strides = [1, 1]} : vector<8x128xf32> to vector<8x8xf32>
    %76 = vector.extract_strided_slice %31 {offsets = [0, 80], sizes = [8, 8], strides = [1, 1]} : vector<8x128xf32> to vector<8x8xf32>
    %cst_34 = arith.constant dense<0.000000e+00> : vector<8x8xf32>
    %77 = tpu.matmul %74, %75, %cst_34 {dimension_numbers = #tpu.dot_dimension_numbers<[1], [1], [0], [0], [0, 0, 1, 0], [], []>} : vector<8x8xf32>, vector<8x8xf32>, vector<8x8xf32> -> vector<8x8xf32>
    %cst_35 = arith.constant 0.353553385 : f32
    %78 = vector.broadcast %cst_35 : f32 to vector<8x8xf32>
    %79 = arith.mulf %77, %78 : vector<8x8xf32>
    %80 = arith.addf %79, %2 : vector<8x8xf32>
    %cst_36 = arith.constant dense<0xFF800000> : vector<8xf32>
    %81 = vector.multi_reduction <maximumf>, %80, %cst_36 [1] : vector<8x8xf32> to vector<8xf32>
    %82 = vector.shape_cast %81 : vector<8xf32> to vector<8x1xf32>
    %83 = vector.broadcast %82 : vector<8x1xf32> to vector<8x8xf32>
    %84 = arith.subf %80, %83 : vector<8x8xf32>
    %85 = math.exp %84 : vector<8x8xf32>
    %cst_37 = arith.constant dense<0.000000e+00> : vector<8xf32>
    %86 = vector.multi_reduction <add>, %85, %cst_37 [1] : vector<8x8xf32> to vector<8xf32>
    %87 = vector.shape_cast %86 : vector<8xf32> to vector<8x1xf32>
    %88 = tpu.reciprocal %87 {approx = true} : vector<8x1xf32> -> vector<8x1xf32>
    %89 = vector.broadcast %88 : vector<8x1xf32> to vector<8x8xf32>
    %90 = arith.mulf %85, %89 : vector<8x8xf32>
    %c0_38 = arith.constant 0 : index
    %c2 = arith.constant 2 : index
    %c0_39 = arith.constant 0 : index
    %c0_40 = arith.constant 0 : index
    %91 = vector.load %arg16[%c0_38, %c2, %c0_39, %c0_40] : memref<1x4x8x8xf32, #tpu.memory_space<vmem>>, vector<1x1x8x8xf32>
    %92 = vector.shape_cast %91 : vector<1x1x8x8xf32> to vector<8x8xf32>
    %93 = vector.shape_cast %90 : vector<8x8xf32> to vector<1x1x8x8xf32>
    tpu.vector_store %arg16[%c0_38, %c2, %c0_39, %c0_40], %93 {strides = array<i32>} : memref<1x4x8x8xf32, #tpu.memory_space<vmem>>, vector<1x1x8x8xf32>,
    %cst_41 = arith.constant dense<0.000000e+00> : vector<8x8xf32>
    %94 = tpu.matmul %90, %76, %cst_41 {dimension_numbers = #tpu.dot_dimension_numbers<[1], [0], [0], [1], [0, 0, 1, 1], [], []>} : vector<8x8xf32>, vector<8x8xf32>, vector<8x8xf32> -> vector<8x8xf32>
    %95 = vector.extract_strided_slice %31 {offsets = [0, 24], sizes = [8, 8], strides = [1, 1]} : vector<8x128xf32> to vector<8x8xf32>
    %96 = vector.extract_strided_slice %31 {offsets = [0, 56], sizes = [8, 8], strides = [1, 1]} : vector<8x128xf32> to vector<8x8xf32>
    %97 = vector.extract_strided_slice %31 {offsets = [0, 88], sizes = [8, 8], strides = [1, 1]} : vector<8x128xf32> to vector<8x8xf32>
    %cst_42 = arith.constant dense<0.000000e+00> : vector<8x8xf32>
    %98 = tpu.matmul %95, %96, %cst_42 {dimension_numbers = #tpu.dot_dimension_numbers<[1], [1], [0], [0], [0, 0, 1, 0], [], []>} : vector<8x8xf32>, vector<8x8xf32>, vector<8x8xf32> -> vector<8x8xf32>
    %cst_43 = arith.constant 0.353553385 : f32
    %99 = vector.broadcast %cst_43 : f32 to vector<8x8xf32>
    %100 = arith.mulf %98, %99 : vector<8x8xf32>
    %101 = arith.addf %100, %2 : vector<8x8xf32>
    %cst_44 = arith.constant dense<0xFF800000> : vector<8xf32>
    %102 = vector.multi_reduction <maximumf>, %101, %cst_44 [1] : vector<8x8xf32> to vector<8xf32>
    %103 = vector.shape_cast %102 : vector<8xf32> to vector<8x1xf32>
    %104 = vector.broadcast %103 : vector<8x1xf32> to vector<8x8xf32>
    %105 = arith.subf %101, %104 : vector<8x8xf32>
    %106 = math.exp %105 : vector<8x8xf32>
    %cst_45 = arith.constant dense<0.000000e+00> : vector<8xf32>
    %107 = vector.multi_reduction <add>, %106, %cst_45 [1] : vector<8x8xf32> to vector<8xf32>
    %108 = vector.shape_cast %107 : vector<8xf32> to vector<8x1xf32>
    %109 = tpu.reciprocal %108 {approx = true} : vector<8x1xf32> -> vector<8x1xf32>
    %110 = vector.broadcast %109 : vector<8x1xf32> to vector<8x8xf32>
    %111 = arith.mulf %106, %110 : vector<8x8xf32>
    %c0_46 = arith.constant 0 : index
    %c3 = arith.constant 3 : index
    %c0_47 = arith.constant 0 : index
    %c0_48 = arith.constant 0 : index
    %112 = vector.load %arg16[%c0_46, %c3, %c0_47, %c0_48] : memref<1x4x8x8xf32, #tpu.memory_space<vmem>>, vector<1x1x8x8xf32>
    %113 = vector.shape_cast %112 : vector<1x1x8x8xf32> to vector<8x8xf32>
    %114 = vector.shape_cast %111 : vector<8x8xf32> to vector<1x1x8x8xf32>
    tpu.vector_store %arg16[%c0_46, %c3, %c0_47, %c0_48], %114 {strides = array<i32>} : memref<1x4x8x8xf32, #tpu.memory_space<vmem>>, vector<1x1x8x8xf32>,
    %cst_49 = arith.constant dense<0.000000e+00> : vector<8x8xf32>
    %115 = tpu.matmul %111, %97, %cst_49 {dimension_numbers = #tpu.dot_dimension_numbers<[1], [0], [0], [1], [0, 0, 1, 1], [], []>} : vector<8x8xf32>, vector<8x8xf32>, vector<8x8xf32> -> vector<8x8xf32>
    %116 = tpu.concatenate %52, %73, %94, %115 in 1 : vector<8x8xf32>, vector<8x8xf32>, vector<8x8xf32>, vector<8x8xf32> -> vector<8x32xf32>
    %c0_50 = arith.constant 0 : index
    %c0_51 = arith.constant 0 : index
    %117 = vector.load %arg7[%c0_50, %c0_51] : memref<32x32xf32, #tpu.memory_space<vmem>>, vector<32x32xf32>
    %cst_52 = arith.constant dense<0.000000e+00> : vector<8x32xf32>
    %118 = tpu.matmul %116, %117, %cst_52 {dimension_numbers = #tpu.dot_dimension_numbers<[1], [0], [0], [1], [0, 0, 1, 1], [], []>} : vector<8x32xf32>, vector<32x32xf32>, vector<8x32xf32> -> vector<8x32xf32>
    %119 = arith.addf %1, %118 : vector<8x32xf32>
    %c0_53 = arith.constant 0 : index
    %c0_54 = arith.constant 0 : index
    %120 = vector.load %arg8[%c0_53, %c0_54] : memref<1x32xf32, #tpu.memory_space<vmem>>, vector<1x32xf32>
    %121 = vector.broadcast %120 : vector<1x32xf32> to vector<8x32xf32>
    %122 = arith.addf %119, %121 : vector<8x32xf32>
    %c0_55 = arith.constant 0 : index
    %c0_56 = arith.constant 0 : index
    %123 = vector.load %arg9[%c0_55, %c0_56] : memref<1x32xf32, #tpu.memory_space<vmem>>, vector<1x32xf32>
    %c0_57 = arith.constant 0 : index
    %c0_58 = arith.constant 0 : index
    %124 = vector.load %arg10[%c0_57, %c0_58] : memref<1x32xf32, #tpu.memory_space<vmem>>, vector<1x32xf32>
    %cst_59 = arith.constant dense<0.000000e+00> : vector<8xf32>
    %125 = vector.multi_reduction <add>, %122, %cst_59 [1] : vector<8x32xf32> to vector<8xf32>
    %126 = vector.shape_cast %125 : vector<8xf32> to vector<8x1xf32>
    %cst_60 = arith.constant 3.200000e+01 : f32
    %127 = vector.broadcast %cst_60 : f32 to vector<8x1xf32>
    %128 = arith.divf %126, %127 : vector<8x1xf32>
    %129 = vector.broadcast %128 : vector<8x1xf32> to vector<8x32xf32>
    %130 = arith.subf %122, %129 : vector<8x32xf32>
    %131 = arith.mulf %130, %130 : vector<8x32xf32>
    %cst_61 = arith.constant dense<0.000000e+00> : vector<8xf32>
    %132 = vector.multi_reduction <add>, %131, %cst_61 [1] : vector<8x32xf32> to vector<8xf32>
    %133 = vector.shape_cast %132 : vector<8xf32> to vector<8x1xf32>
    %cst_62 = arith.constant 3.200000e+01 : f32
    %134 = vector.broadcast %cst_62 : f32 to vector<8x1xf32>
    %135 = arith.divf %133, %134 : vector<8x1xf32>
    %136 = vector.broadcast %128 : vector<8x1xf32> to vector<8x32xf32>
    %137 = arith.subf %122, %136 : vector<8x32xf32>
    %cst_63 = arith.constant 9.99999974E-6 : f32
    %138 = vector.broadcast %cst_63 : f32 to vector<8x1xf32>
    %139 = arith.addf %135, %138 : vector<8x1xf32>
    %140 = math.rsqrt %139 : vector<8x1xf32>
    %141 = vector.broadcast %140 : vector<8x1xf32> to vector<8x32xf32>
    %142 = arith.mulf %137, %141 : vector<8x32xf32>
    %143 = vector.broadcast %123 : vector<1x32xf32> to vector<8x32xf32>
    %144 = arith.mulf %142, %143 : vector<8x32xf32>
    %145 = vector.broadcast %124 : vector<1x32xf32> to vector<8x32xf32>
    %146 = arith.addf %144, %145 : vector<8x32xf32>
    %c0_64 = arith.constant 0 : index
    %c0_65 = arith.constant 0 : index
    %147 = vector.load %arg11[%c0_64, %c0_65] : memref<32x128xf32, #tpu.memory_space<vmem>>, vector<32x128xf32>
    %cst_66 = arith.constant dense<0.000000e+00> : vector<8x128xf32>
    %148 = tpu.matmul %146, %147, %cst_66 {dimension_numbers = #tpu.dot_dimension_numbers<[1], [0], [0], [1], [0, 0, 1, 1], [], []>} : vector<8x32xf32>, vector<32x128xf32>, vector<8x128xf32> -> vector<8x128xf32>
    %c0_67 = arith.constant 0 : index
    %c0_68 = arith.constant 0 : index
    %149 = vector.load %arg12[%c0_67, %c0_68] : memref<1x128xf32, #tpu.memory_space<vmem>>, vector<1x128xf32>
    %150 = vector.broadcast %149 : vector<1x128xf32> to vector<8x128xf32>
    %151 = arith.addf %148, %150 : vector<8x128xf32>
    %cst_69 = arith.constant 0.000000e+00 : f32
    %152 = vector.broadcast %cst_69 : f32 to vector<8x128xf32>
    %153 = arith.maximumf %151, %152 : vector<8x128xf32>
    %c0_70 = arith.constant 0 : index
    %c0_71 = arith.constant 0 : index
    %154 = vector.load %arg13[%c0_70, %c0_71] : memref<128x32xf32, #tpu.memory_space<vmem>>, vector<128x32xf32>
    %cst_72 = arith.constant dense<0.000000e+00> : vector<8x32xf32>
    %155 = tpu.matmul %153, %154, %cst_72 {dimension_numbers = #tpu.dot_dimension_numbers<[1], [0], [0], [1], [0, 0, 1, 1], [], []>} : vector<8x128xf32>, vector<128x32xf32>, vector<8x32xf32> -> vector<8x32xf32>
    %156 = arith.addf %122, %155 : vector<8x32xf32>
    %c0_73 = arith.constant 0 : index
    %c0_74 = arith.constant 0 : index
    %157 = vector.load %arg14[%c0_73, %c0_74] : memref<1x32xf32, #tpu.memory_space<vmem>>, vector<1x32xf32>
    %158 = vector.broadcast %157 : vector<1x32xf32> to vector<8x32xf32>
    %159 = arith.addf %156, %158 : vector<8x32xf32>
    %c0_75 = arith.constant 0 : index
    %c0_76 = arith.constant 0 : index
    %c0_77 = arith.constant 0 : index
    %160 = vector.load %arg15[%c0_75, %c0_76, %c0_77] : memref<1x8x32xf32, #tpu.memory_space<vmem>>, vector<1x8x32xf32>
    %161 = vector.shape_cast %160 : vector<1x8x32xf32> to vector<8x32xf32>
    %162 = vector.shape_cast %159 : vector<8x32xf32> to vector<1x8x32xf32>
    tpu.vector_store %arg15[%c0_75, %c0_76, %c0_77], %162 {strides = array<i32>} : memref<1x8x32xf32, #tpu.memory_space<vmem>>, vector<1x8x32xf32>,
    return
  }
  func.func @transform_0(%arg0: i32) -> (i32, i32, i32) {
    %c0_i32 = arith.constant 0 : i32
    %c0_i32_0 = arith.constant 0 : i32
    %c0_i32_1 = arith.constant 0 : i32
    return %arg0, %c0_i32, %c0_i32_0 : i32, i32, i32
  }
  func.func @transform_1(%arg0: i32) -> (i32, i32) {
    %c0_i32 = arith.constant 0 : i32
    %c0_i32_0 = arith.constant 0 : i32
    %c0_i32_1 = arith.constant 0 : i32
    return %c0_i32, %c0_i32_0 : i32, i32
  }
  func.func @transform_2(%arg0: i32) -> (i32, i32) {
    %c0_i32 = arith.constant 0 : i32
    %c0_i32_0 = arith.constant 0 : i32
    %c0_i32_1 = arith.constant 0 : i32
    return %c0_i32, %c0_i32_0 : i32, i32
  }
  func.func @transform_3(%arg0: i32) -> (i32, i32) {
    %c0_i32 = arith.constant 0 : i32
    %c0_i32_0 = arith.constant 0 : i32
    %c0_i32_1 = arith.constant 0 : i32
    return %c0_i32, %c0_i32_0 : i32, i32
  }
  func.func @transform_4(%arg0: i32) -> (i32, i32) {
    %c0_i32 = arith.constant 0 : i32
    %c0_i32_0 = arith.constant 0 : i32
    %c0_i32_1 = arith.constant 0 : i32
    return %c0_i32, %c0_i32_0 : i32, i32
  }
  func.func @transform_5(%arg0: i32) -> (i32, i32) {
    %c0_i32 = arith.constant 0 : i32
    %c0_i32_0 = arith.constant 0 : i32
    %c0_i32_1 = arith.constant 0 : i32
    return %c0_i32, %c0_i32_0 : i32, i32
  }
  func.func @transform_6(%arg0: i32) -> (i32, i32) {
    %c0_i32 = arith.constant 0 : i32
    %c0_i32_0 = arith.constant 0 : i32
    %c0_i32_1 = arith.constant 0 : i32
    return %c0_i32, %c0_i32_0 : i32, i32
  }
  func.func @transform_7(%arg0: i32) -> (i32, i32) {
    %c0_i32 = arith.constant 0 : i32
    %c0_i32_0 = arith.constant 0 : i32
    %c0_i32_1 = arith.constant 0 : i32
    return %c0_i32, %c0_i32_0 : i32, i32
  }
  func.func @transform_8(%arg0: i32) -> (i32, i32) {
    %c0_i32 = arith.constant 0 : i32
    %c0_i32_0 = arith.constant 0 : i32
    %c0_i32_1 = arith.constant 0 : i32
    return %c0_i32, %c0_i32_0 : i32, i32
  }
  func.func @transform_9(%arg0: i32) -> (i32, i32) {
    %c0_i32 = arith.constant 0 : i32
    %c0_i32_0 = arith.constant 0 : i32
    %c0_i32_1 = arith.constant 0 : i32
    return %c0_i32, %c0_i32_0 : i32, i32
  }
  func.func @transform_10(%arg0: i32) -> (i32, i32) {
    %c0_i32 = arith.constant 0 : i32
    %c0_i32_0 = arith.constant 0 : i32
    %c0_i32_1 = arith.constant 0 : i32
    return %c0_i32, %c0_i32_0 : i32, i32
  }
  func.func @transform_11(%arg0: i32) -> (i32, i32) {
    %c0_i32 = arith.constant 0 : i32
    %c0_i32_0 = arith.constant 0 : i32
    %c0_i32_1 = arith.constant 0 : i32
    return %c0_i32, %c0_i32_0 : i32, i32
  }
  func.func @transform_12(%arg0: i32) -> (i32, i32) {
    %c0_i32 = arith.constant 0 : i32
    %c0_i32_0 = arith.constant 0 : i32
    %c0_i32_1 = arith.constant 0 : i32
    return %c0_i32, %c0_i32_0 : i32, i32
  }
  func.func @transform_13(%arg0: i32) -> (i32, i32) {
    %c0_i32 = arith.constant 0 : i32
    %c0_i32_0 = arith.constant 0 : i32
    %c0_i32_1 = arith.constant 0 : i32
    return %c0_i32, %c0_i32_0 : i32, i32
  }
  func.func @transform_14(%arg0: i32) -> (i32, i32, i32) {
    %c0_i32 = arith.constant 0 : i32
    %c0_i32_0 = arith.constant 0 : i32
    %c0_i32_1 = arith.constant 0 : i32
    return %arg0, %c0_i32, %c0_i32_0 : i32, i32, i32
  }
  func.func @transform_15(%arg0: i32) -> (i32, i32, i32, i32) {
    %c0_i32 = arith.constant 0 : i32
    %c0_i32_0 = arith.constant 0 : i32
    %c0_i32_1 = arith.constant 0 : i32
    %c0_i32_2 = arith.constant 0 : i32
    return %arg0, %c0_i32, %c0_i32_0, %c0_i32_1 : i32, i32, i32, i32
  }
}

</mosaic_0001>

<llo_original>
// kernel: tpu_custom_call.1
$region0: #{tpu_custom_call.1}
  #allocation0 [shape = 'u32[]', space=smem, size = 0x4, offset = 0x4, fixed_abs, tag = 'smem constant byte address 0x4 - core index']
  #allocation1 [shape = 'u32[144,128]{1,0:T(1,128)}', space=vmem, size = 0x12000, scoped, tag = 'internal scratch']
  %s0 = inlined_call_operand.vmem [shape: f32[2,8,32], index: 0, kind: input, shape index: {}]
  %s1 = inlined_call_operand.vmem [shape: f32[8,8], index: 1, kind: input, shape index: {}]
  %s2 = inlined_call_operand.vmem [shape: f32[1,32], index: 2, kind: input, shape index: {}]
  %s3 = inlined_call_operand.vmem [shape: f32[1,32], index: 3, kind: input, shape index: {}]
  %s4 = inlined_call_operand.vmem [shape: f32[32,128], index: 4, kind: input, shape index: {}]
  %s5 = inlined_call_operand.vmem [shape: f32[1,128], index: 5, kind: input, shape index: {}]
  %s6 = inlined_call_operand.vmem [shape: f32[32,32], index: 6, kind: input, shape index: {}]
  %s7 = inlined_call_operand.vmem [shape: f32[1,32], index: 7, kind: input, shape index: {}]
  %s8 = inlined_call_operand.vmem [shape: f32[1,32], index: 8, kind: input, shape index: {}]
  %s9 = inlined_call_operand.vmem [shape: f32[1,32], index: 9, kind: input, shape index: {}]
  %s10 = inlined_call_operand.vmem [shape: f32[32,128], index: 10, kind: input, shape index: {}]
  %s11 = inlined_call_operand.vmem [shape: f32[1,128], index: 11, kind: input, shape index: {}]
  %s12 = inlined_call_operand.vmem [shape: f32[128,32], index: 12, kind: input, shape index: {}]
  %s13 = inlined_call_operand.vmem [shape: f32[1,32], index: 13, kind: input, shape index: {}]
  %s14 = inlined_call_operand.hbm [shape: f32[2,8,32], index: 14, kind: output, shape index: {0}]
  %s15 = inlined_call_operand.hbm [shape: f32[2,4,8,8], index: 15, kind: output, shape index: {1}]
  %16 = xla_tuple %s14, %s15
  %s17 = sld [smem:[#allocation0]]
  $region97: #{tpu_custom_call.1} parent=0
    _
  %s19 = ssub.s32 1, %s17
  %s20 = scalar_select 0, %s19, %s17
  $region1: #{tpu_custom_call.1} parent=0
    #allocation2 [shape = 'u8[8192]{0}', space=vmem, size = 0x2000, scoped, tag = 'output window, operand 0']
    #allocation3 [shape = 's32[2]{0}', space=sflag, size = 0x8, scoped, tag = 'scoped memory for tpu_custom_call.1']
    #allocation4 [shape = 'u8[32768]{0}', space=vmem, size = 0x8000, scoped, tag = 'output window, operand 1']
    #allocation5 [shape = 's32[2]{0}', space=sflag, size = 0x8, scoped, tag = 'scoped memory for tpu_custom_call.1']
    %21 = vsyncpa [#allocation3], 0
    %s22 = scalar_lea.sflag [#allocation3], 1
    %23 = vsyncpa %s22, 0
    %24 = vsyncpa [#allocation5], 0
    %s25 = scalar_lea.sflag [#allocation5], 1
    %26 = vsyncpa %s25, 0
    loop: start=0, step=1, limit=4
    $region2: #{tpu_custom_call.1} parent=1 // loop_pre_header
      _
    $region3: #{tpu_custom_call.1} parent=1 // loop_header
      %s28 = sphi 0, %s32
      %p29 = scmp.ge.s32.totalorder %s28, 4
      %s38 = sphi 0, %s40
      %s41 = sphi 0, %s38
      %s42 = sphi 0, %s41
      %s58 = sphi 0, %s42
      %s62 = sphi 0, %s62
      %s64 = sphi 0, %s62
      %s65 = sphi 0, %s64
      %s79 = sphi 0, %s65
      %s83 = sphi 0, %s83
      %s85 = sphi 0, %s83
      %s86 = sphi 0, %s85
      %s100 = sphi 0, %s86
      %s104 = sphi 0, %s104
      %s106 = sphi 0, %s104
      %s107 = sphi 0, %s106
      %s121 = sphi 0, %s107
      %s125 = sphi 0, %s125
      %s127 = sphi 0, %s125
      %s128 = sphi 0, %s127
      %s142 = sphi 0, %s128
      %s146 = sphi 0, %s146
      %s148 = sphi 0, %s146
      %s149 = sphi 0, %s148
      %s163 = sphi 0, %s149
      %s167 = sphi 0, %s167
      %s169 = sphi 0, %s167
      %s170 = sphi 0, %s169
      %s184 = sphi 0, %s170
      %s188 = sphi 0, %s188
      %s190 = sphi 0, %s188
      %s191 = sphi 0, %s190
      %s205 = sphi 0, %s191
      %s209 = sphi 0, %s209
      %s211 = sphi 0, %s209
      %s212 = sphi 0, %s211
      %s226 = sphi 0, %s212
      %s230 = sphi 0, %s230
      %s232 = sphi 0, %s230
      %s233 = sphi 0, %s232
      %s247 = sphi 0, %s233
      %s251 = sphi 0, %s251
      %s253 = sphi 0, %s251
      %s254 = sphi 0, %s253
      %s268 = sphi 0, %s254
      %s272 = sphi 0, %s272
      %s274 = sphi 0, %s272
      %s275 = sphi 0, %s274
      %s289 = sphi 0, %s275
      %s293 = sphi 0, %s293
      %s295 = sphi 0, %s293
      %s296 = sphi 0, %s295
      %s310 = sphi 0, %s296
      %s314 = sphi 0, %s314
      %s316 = sphi 0, %s314
      %s317 = sphi 0, %s316
      %s331 = sphi 0, %s317
      %s337 = sphi 0, %s339
      %s340 = sphi 0, %s337
      %s341 = sphi 0, %s340
      %s357 = sphi 0, %s341
      %s363 = sphi 0, %s365
      %s366 = sphi 0, %s363
      %s367 = sphi 0, %s366
      %s383 = sphi 0, %s367
    $region4: #{tpu_custom_call.1} parent=1 // loop_header_branch
      %31 = sbr.rel (%p29) target = $region8
    $region5: #{tpu_custom_call.1} parent=1 // loop_body
      %s33 = ssub.s32 %s28, 1
      %s34 = ssub.s32 %s28, 2
      %s35 = sadd.s32 %s28, 1
      %s36 = ssub.s32 %s28, %s35
      %p37 = scmp.eq.s32.totalorder %s36, 0
      %s39 = sadd.s32 %s38, 1
      %s40 = scalar_select %p37, %s38, %s39
      %p43 = pneg %p37
      %p44 = scmp.eq.s32.totalorder %s28, 1
      %p45 = por %p43, %p44
      %p46 = scmp.ne.s32.totalorder %s38, %s41
      %p47 = scmp.eq.s32.totalorder %s28, 0
      %p48 = por %p46, %p47
      %p49 = scmp.ne.s32.totalorder %s38, %s41
      %p50 = scmp.eq.s32.totalorder %s33, 1
      %p51 = por %p49, %p50
      %p52 = scmp.ne.s32.totalorder %s41, %s42
      %p53 = scmp.eq.s32.totalorder %s33, 0
      %p54 = por %p52, %p53
      %p55 = scmp.ne.s32.totalorder %s41, %s42
      %p56 = scmp.eq.s32.totalorder %s34, 1
      %p57 = por %p55, %p56
      %p59 = scmp.ne.s32.totalorder %s42, %s58
      %p60 = scmp.eq.s32.totalorder %s34, 0
      %p61 = por %p59, %p60
      %s63 = sadd.s32 %s62, 1
      %p66 = scmp.eq.s32.totalorder %s28, 1
      %p67 = scmp.ne.s32.totalorder %s62, %s64
      %p68 = scmp.eq.s32.totalorder %s28, 0
      %p69 = por %p67, %p68
      %p70 = scmp.ne.s32.totalorder %s62, %s64
      %p71 = scmp.eq.s32.totalorder %s33, 1
      %p72 = por %p70, %p71
      %p73 = scmp.ne.s32.totalorder %s64, %s65
      %p74 = scmp.eq.s32.totalorder %s33, 0
      %p75 = por %p73, %p74
      %p76 = scmp.ne.s32.totalorder %s64, %s65
      %p77 = scmp.eq.s32.totalorder %s34, 1
      %p78 = por %p76, %p77
      %p80 = scmp.ne.s32.totalorder %s65, %s79
      %p81 = scmp.eq.s32.totalorder %s34, 0
      %p82 = por %p80, %p81
      %s84 = sadd.s32 %s83, 1
      %p87 = scmp.eq.s32.totalorder %s28, 1
      %p88 = scmp.ne.s32.totalorder %s83, %s85
      %p89 = scmp.eq.s32.totalorder %s28, 0
      %p90 = por %p88, %p89
      %p91 = scmp.ne.s32.totalorder %s83, %s85
      %p92 = scmp.eq.s32.totalorder %s33, 1
      %p93 = por %p91, %p92
      %p94 = scmp.ne.s32.totalorder %s85, %s86
      %p95 = scmp.eq.s32.totalorder %s33, 0
      %p96 = por %p94, %p95
      %p97 = scmp.ne.s32.totalorder %s85, %s86
      %p98 = scmp.eq.s32.totalorder %s34, 1
      %p99 = por %p97, %p98
      %p101 = scmp.ne.s32.totalorder %s86, %s100
      %p102 = scmp.eq.s32.totalorder %s34, 0
      %p103 = por %p101, %p102
      %s105 = sadd.s32 %s104, 1
      %p108 = scmp.eq.s32.totalorder %s28, 1
      %p109 = scmp.ne.s32.totalorder %s104, %s106
      %p110 = scmp.eq.s32.totalorder %s28, 0
      %p111 = por %p109, %p110
      %p112 = scmp.ne.s32.totalorder %s104, %s106
      %p113 = scmp.eq.s32.totalorder %s33, 1
      %p114 = por %p112, %p113
      %p115 = scmp.ne.s32.totalorder %s106, %s107
      %p116 = scmp.eq.s32.totalorder %s33, 0
      %p117 = por %p115, %p116
      %p118 = scmp.ne.s32.totalorder %s106, %s107
      %p119 = scmp.eq.s32.totalorder %s34, 1
      %p120 = por %p118, %p119
      %p122 = scmp.ne.s32.totalorder %s107, %s121
      %p123 = scmp.eq.s32.totalorder %s34, 0
      %p124 = por %p122, %p123
      %s126 = sadd.s32 %s125, 1
      %p129 = scmp.eq.s32.totalorder %s28, 1
      %p130 = scmp.ne.s32.totalorder %s125, %s127
      %p131 = scmp.eq.s32.totalorder %s28, 0
      %p132 = por %p130, %p131
      %p133 = scmp.ne.s32.totalorder %s125, %s127
      %p134 = scmp.eq.s32.totalorder %s33, 1
      %p135 = por %p133, %p134
      %p136 = scmp.ne.s32.totalorder %s127, %s128
      %p137 = scmp.eq.s32.totalorder %s33, 0
      %p138 = por %p136, %p137
      %p139 = scmp.ne.s32.totalorder %s127, %s128
      %p140 = scmp.eq.s32.totalorder %s34, 1
      %p141 = por %p139, %p140
      %p143 = scmp.ne.s32.totalorder %s128, %s142
      %p144 = scmp.eq.s32.totalorder %s34, 0
      %p145 = por %p143, %p144
      %s147 = sadd.s32 %s146, 1
      %p150 = scmp.eq.s32.totalorder %s28, 1
      %p151 = scmp.ne.s32.totalorder %s146, %s148
      %p152 = scmp.eq.s32.totalorder %s28, 0
      %p153 = por %p151, %p152
      %p154 = scmp.ne.s32.totalorder %s146, %s148
      %p155 = scmp.eq.s32.totalorder %s33, 1
      %p156 = por %p154, %p155
      %p157 = scmp.ne.s32.totalorder %s148, %s149
      %p158 = scmp.eq.s32.totalorder %s33, 0
      %p159 = por %p157, %p158
      %p160 = scmp.ne.s32.totalorder %s148, %s149
      %p161 = scmp.eq.s32.totalorder %s34, 1
      %p162 = por %p160, %p161
      %p164 = scmp.ne.s32.totalorder %s149, %s163
      %p165 = scmp.eq.s32.totalorder %s34, 0
      %p166 = por %p164, %p165
      %s168 = sadd.s32 %s167, 1
      %p171 = scmp.eq.s32.totalorder %s28, 1
      %p172 = scmp.ne.s32.totalorder %s167, %s169
      %p173 = scmp.eq.s32.totalorder %s28, 0
      %p174 = por %p172, %p173
      %p175 = scmp.ne.s32.totalorder %s167, %s169
      %p176 = scmp.eq.s32.totalorder %s33, 1
      %p177 = por %p175, %p176
      %p178 = scmp.ne.s32.totalorder %s169, %s170
      %p179 = scmp.eq.s32.totalorder %s33, 0
      %p180 = por %p178, %p179
      %p181 = scmp.ne.s32.totalorder %s169, %s170
      %p182 = scmp.eq.s32.totalorder %s34, 1
      %p183 = por %p181, %p182
      %p185 = scmp.ne.s32.totalorder %s170, %s184
      %p186 = scmp.eq.s32.totalorder %s34, 0
      %p187 = por %p185, %p186
      %s189 = sadd.s32 %s188, 1
      %p192 = scmp.eq.s32.totalorder %s28, 1
      %p193 = scmp.ne.s32.totalorder %s188, %s190
      %p194 = scmp.eq.s32.totalorder %s28, 0
      %p195 = por %p193, %p194
      %p196 = scmp.ne.s32.totalorder %s188, %s190
      %p197 = scmp.eq.s32.totalorder %s33, 1
      %p198 = por %p196, %p197
      %p199 = scmp.ne.s32.totalorder %s190, %s191
      %p200 = scmp.eq.s32.totalorder %s33, 0
      %p201 = por %p199, %p200
      %p202 = scmp.ne.s32.totalorder %s190, %s191
      %p203 = scmp.eq.s32.totalorder %s34, 1
      %p204 = por %p202, %p203
      %p206 = scmp.ne.s32.totalorder %s191, %s205
      %p207 = scmp.eq.s32.totalorder %s34, 0
      %p208 = por %p206, %p207
      %s210 = sadd.s32 %s209, 1
      %p213 = scmp.eq.s32.totalorder %s28, 1
      %p214 = scmp.ne.s32.totalorder %s209, %s211
      %p215 = scmp.eq.s32.totalorder %s28, 0
      %p216 = por %p214, %p215
      %p217 = scmp.ne.s32.totalorder %s209, %s211
      %p218 = scmp.eq.s32.totalorder %s33, 1
      %p219 = por %p217, %p218
      %p220 = scmp.ne.s32.totalorder %s211, %s212
      %p221 = scmp.eq.s32.totalorder %s33, 0
      %p222 = por %p220, %p221
      %p223 = scmp.ne.s32.totalorder %s211, %s212
      %p224 = scmp.eq.s32.totalorder %s34, 1
      %p225 = por %p223, %p224
      %p227 = scmp.ne.s32.totalorder %s212, %s226
      %p228 = scmp.eq.s32.totalorder %s34, 0
      %p229 = por %p227, %p228
      %s231 = sadd.s32 %s230, 1
      %p234 = scmp.eq.s32.totalorder %s28, 1
      %p235 = scmp.ne.s32.totalorder %s230, %s232
      %p236 = scmp.eq.s32.totalorder %s28, 0
      %p237 = por %p235, %p236
      %p238 = scmp.ne.s32.totalorder %s230, %s232
      %p239 = scmp.eq.s32.totalorder %s33, 1
      %p240 = por %p238, %p239
      %p241 = scmp.ne.s32.totalorder %s232, %s233
      %p242 = scmp.eq.s32.totalorder %s33, 0
      %p243 = por %p241, %p242
      %p244 = scmp.ne.s32.totalorder %s232, %s233
      %p245 = scmp.eq.s32.totalorder %s34, 1
      %p246 = por %p244, %p245
      %p248 = scmp.ne.s32.totalorder %s233, %s247
      %p249 = scmp.eq.s32.totalorder %s34, 0
      %p250 = por %p248, %p249
      %s252 = sadd.s32 %s251, 1
      %p255 = scmp.eq.s32.totalorder %s28, 1
      %p256 = scmp.ne.s32.totalorder %s251, %s253
      %p257 = scmp.eq.s32.totalorder %s28, 0
      %p258 = por %p256, %p257
      %p259 = scmp.ne.s32.totalorder %s251, %s253
      %p260 = scmp.eq.s32.totalorder %s33, 1
      %p261 = por %p259, %p260
      %p262 = scmp.ne.s32.totalorder %s253, %s254
      %p263 = scmp.eq.s32.totalorder %s33, 0
      %p264 = por %p262, %p263
      %p265 = scmp.ne.s32.totalorder %s253, %s254
      %p266 = scmp.eq.s32.totalorder %s34, 1
      %p267 = por %p265, %p266
      %p269 = scmp.ne.s32.totalorder %s254, %s268
      %p270 = scmp.eq.s32.totalorder %s34, 0
      %p271 = por %p269, %p270
      %s273 = sadd.s32 %s272, 1
      %p276 = scmp.eq.s32.totalorder %s28, 1
      %p277 = scmp.ne.s32.totalorder %s272, %s274
      %p278 = scmp.eq.s32.totalorder %s28, 0
      %p279 = por %p277, %p278
      %p280 = scmp.ne.s32.totalorder %s272, %s274
      %p281 = scmp.eq.s32.totalorder %s33, 1
      %p282 = por %p280, %p281
      %p283 = scmp.ne.s32.totalorder %s274, %s275
      %p284 = scmp.eq.s32.totalorder %s33, 0
      %p285 = por %p283, %p284
      %p286 = scmp.ne.s32.totalorder %s274, %s275
      %p287 = scmp.eq.s32.totalorder %s34, 1
      %p288 = por %p286, %p287
      %p290 = scmp.ne.s32.totalorder %s275, %s289
      %p291 = scmp.eq.s32.totalorder %s34, 0
      %p292 = por %p290, %p291
      %s294 = sadd.s32 %s293, 1
      %p297 = scmp.eq.s32.totalorder %s28, 1
      %p298 = scmp.ne.s32.totalorder %s293, %s295
      %p299 = scmp.eq.s32.totalorder %s28, 0
      %p300 = por %p298, %p299
      %p301 = scmp.ne.s32.totalorder %s293, %s295
      %p302 = scmp.eq.s32.totalorder %s33, 1
      %p303 = por %p301, %p302
      %p304 = scmp.ne.s32.totalorder %s295, %s296
      %p305 = scmp.eq.s32.totalorder %s33, 0
      %p306 = por %p304, %p305
      %p307 = scmp.ne.s32.totalorder %s295, %s296
      %p308 = scmp.eq.s32.totalorder %s34, 1
      %p309 = por %p307, %p308
      %p311 = scmp.ne.s32.totalorder %s296, %s310
      %p312 = scmp.eq.s32.totalorder %s34, 0
      %p313 = por %p311, %p312
      %s315 = sadd.s32 %s314, 1
      %p318 = scmp.eq.s32.totalorder %s28, 1
      %p319 = scmp.ne.s32.totalorder %s314, %s316
      %p320 = scmp.eq.s32.totalorder %s28, 0
      %p321 = por %p319, %p320
      %p322 = scmp.ne.s32.totalorder %s314, %s316
      %p323 = scmp.eq.s32.totalorder %s33, 1
      %p324 = por %p322, %p323
      %p325 = scmp.ne.s32.totalorder %s316, %s317
      %p326 = scmp.eq.s32.totalorder %s33, 0
      %p327 = por %p325, %p326
      %p328 = scmp.ne.s32.totalorder %s316, %s317
      %p329 = scmp.eq.s32.totalorder %s34, 1
      %p330 = por %p328, %p329
      %p332 = scmp.ne.s32.totalorder %s317, %s331
      %p333 = scmp.eq.s32.totalorder %s34, 0
      %p334 = por %p332, %p333
      %s335 = ssub.s32 %s28, %s35
      %p336 = scmp.eq.s32.totalorder %s335, 0
      %s338 = sadd.s32 %s337, 1
      %s339 = scalar_select %p336, %s337, %s338
      %p342 = pneg %p336
      %p343 = scmp.eq.s32.totalorder %s28, 1
      %p344 = por %p342, %p343
      %p345 = scmp.ne.s32.totalorder %s337, %s340
      %p346 = scmp.eq.s32.totalorder %s28, 0
      %p347 = por %p345, %p346
      %p348 = scmp.ne.s32.totalorder %s337, %s340
      %p349 = scmp.eq.s32.totalorder %s33, 1
      %p350 = por %p348, %p349
      %p351 = scmp.ne.s32.totalorder %s340, %s341
      %p352 = scmp.eq.s32.totalorder %s33, 0
      %p353 = por %p351, %p352
      %p354 = scmp.ne.s32.totalorder %s340, %s341
      %p355 = scmp.eq.s32.totalorder %s34, 1
      %p356 = por %p354, %p355
      %p358 = scmp.ne.s32.totalorder %s341, %s357
      %p359 = scmp.eq.s32.totalorder %s34, 0
      %p360 = por %p358, %p359
      %s361 = ssub.s32 %s28, %s35
      %p362 = scmp.eq.s32.totalorder %s361, 0
      %s364 = sadd.s32 %s363, 1
      %s365 = scalar_select %p362, %s363, %s364
      %p368 = pneg %p362
      %p369 = scmp.eq.s32.totalorder %s28, 1
      %p370 = por %p368, %p369
      %p371 = scmp.ne.s32.totalorder %s363, %s366
      %p372 = scmp.eq.s32.totalorder %s28, 0
      %p373 = por %p371, %p372
      %p374 = scmp.ne.s32.totalorder %s363, %s366
      %p375 = scmp.eq.s32.totalorder %s33, 1
      %p376 = por %p374, %p375
      %p377 = scmp.ne.s32.totalorder %s366, %s367
      %p378 = scmp.eq.s32.totalorder %s33, 0
      %p379 = por %p377, %p378
      %p380 = scmp.ne.s32.totalorder %s366, %s367
      %p381 = scmp.eq.s32.totalorder %s34, 1
      %p382 = por %p380, %p381
      %p384 = scmp.ne.s32.totalorder %s367, %s383
      %p385 = scmp.eq.s32.totalorder %s34, 0
      %p386 = por %p384, %p385
      %p387 = scmp.le.s32.totalorder 1, %s28
      %p388 = scmp.lt.s32.totalorder %s28, 3
      %p389 = pnand %p387, %p388
      %p390 = pneg %p389
      // Predicated region
      $region9: #{tpu_custom_call.1} parent=5 // pred_check
        _
      $region10: #{tpu_custom_call.1} parent=5 // pred_check_branch
        %392 = sbr.rel (%p389) target = $region12
      $region11: #{tpu_custom_call.1} parent=5 // pred_region
        %s393 = ssub.s32 %s28, 1
        // Predicated region
        $region13: #{tpu_custom_call.1} parent=11 // pred_check
          %p394 = pneg %p75
        $region14: #{tpu_custom_call.1} parent=11 // pred_check_branch
          %396 = sbr.rel (%p394) target = $region16
        $region15: #{tpu_custom_call.1} parent=11 // pred_region
          _
        $region16: #{tpu_custom_call.1} parent=11 // pred_fallthru
          _
        // Predicated region
        $region17: #{tpu_custom_call.1} parent=11 // pred_check
          %p397 = pneg %p96
        $region18: #{tpu_custom_call.1} parent=11 // pred_check_branch
          %399 = sbr.rel (%p397) target = $region20
        $region19: #{tpu_custom_call.1} parent=11 // pred_region
          _
        $region20: #{tpu_custom_call.1} parent=11 // pred_fallthru
          _
        // Predicated region
        $region21: #{tpu_custom_call.1} parent=11 // pred_check
          %p400 = pneg %p117
        $region22: #{tpu_custom_call.1} parent=11 // pred_check_branch
          %402 = sbr.rel (%p400) target = $region24
        $region23: #{tpu_custom_call.1} parent=11 // pred_region
          _
        $region24: #{tpu_custom_call.1} parent=11 // pred_fallthru
          _
        // Predicated region
        $region25: #{tpu_custom_call.1} parent=11 // pred_check
          %p403 = pneg %p138
        $region26: #{tpu_custom_call.1} parent=11 // pred_check_branch
          %405 = sbr.rel (%p403) target = $region28
        $region27: #{tpu_custom_call.1} parent=11 // pred_region
          _
        $region28: #{tpu_custom_call.1} parent=11 // pred_fallthru
          _
        // Predicated region
        $region29: #{tpu_custom_call.1} parent=11 // pred_check
          %p406 = pneg %p159
        $region30: #{tpu_custom_call.1} parent=11 // pred_check_branch
          %408 = sbr.rel (%p406) target = $region32
        $region31: #{tpu_custom_call.1} parent=11 // pred_region
          _
        $region32: #{tpu_custom_call.1} parent=11 // pred_fallthru
          _
        // Predicated region
        $region33: #{tpu_custom_call.1} parent=11 // pred_check
          %p409 = pneg %p180
        $region34: #{tpu_custom_call.1} parent=11 // pred_check_branch
          %411 = sbr.rel (%p409) target = $region36
        $region35: #{tpu_custom_call.1} parent=11 // pred_region
          _
        $region36: #{tpu_custom_call.1} parent=11 // pred_fallthru
          _
        // Predicated region
        $region37: #{tpu_custom_call.1} parent=11 // pred_check
          %p412 = pneg %p201
        $region38: #{tpu_custom_call.1} parent=11 // pred_check_branch
          %414 = sbr.rel (%p412) target = $region40
        $region39: #{tpu_custom_call.1} parent=11 // pred_region
          _
        $region40: #{tpu_custom_call.1} parent=11 // pred_fallthru
          _
        // Predicated region
        $region41: #{tpu_custom_call.1} parent=11 // pred_check
          %p415 = pneg %p222
        $region42: #{tpu_custom_call.1} parent=11 // pred_check_branch
          %417 = sbr.rel (%p415) target = $region44
        $region43: #{tpu_custom_call.1} parent=11 // pred_region
          _
        $region44: #{tpu_custom_call.1} parent=11 // pred_fallthru
          _
        // Predicated region
        $region45: #{tpu_custom_call.1} parent=11 // pred_check
          %p418 = pneg %p243
        $region46: #{tpu_custom_call.1} parent=11 // pred_check_branch
          %420 = sbr.rel (%p418) target = $region48
        $region47: #{tpu_custom_call.1} parent=11 // pred_region
          _
        $region48: #{tpu_custom_call.1} parent=11 // pred_fallthru
          _
        // Predicated region
        $region49: #{tpu_custom_call.1} parent=11 // pred_check
          %p421 = pneg %p264
        $region50: #{tpu_custom_call.1} parent=11 // pred_check_branch
          %423 = sbr.rel (%p421) target = $region52
        $region51: #{tpu_custom_call.1} parent=11 // pred_region
          _
        $region52: #{tpu_custom_call.1} parent=11 // pred_fallthru
          _
        // Predicated region
        $region53: #{tpu_custom_call.1} parent=11 // pred_check
          %p424 = pneg %p285
        $region54: #{tpu_custom_call.1} parent=11 // pred_check_branch
          %426 = sbr.rel (%p424) target = $region56
        $region55: #{tpu_custom_call.1} parent=11 // pred_region
          _
        $region56: #{tpu_custom_call.1} parent=11 // pred_fallthru
          _
        // Predicated region
        $region57: #{tpu_custom_call.1} parent=11 // pred_check
          %p427 = pneg %p306
        $region58: #{tpu_custom_call.1} parent=11 // pred_check_branch
          %429 = sbr.rel (%p427) target = $region60
        $region59: #{tpu_custom_call.1} parent=11 // pred_region
          _
        $region60: #{tpu_custom_call.1} parent=11 // pred_fallthru
          _
        // Predicated region
        $region61: #{tpu_custom_call.1} parent=11 // pred_check
          %p430 = pneg %p327
        $region62: #{tpu_custom_call.1} parent=11 // pred_check_branch
          %432 = sbr.rel (%p430) target = $region64
        $region63: #{tpu_custom_call.1} parent=11 // pred_region
          _
        $region64: #{tpu_custom_call.1} parent=11 // pred_fallthru
          _
      $region12: #{tpu_custom_call.1} parent=5 // pred_fallthru
        _
      %p433 = scmp.lt.s32.totalorder %s28, 2
      // Predicated region
      $region65: #{tpu_custom_call.1} parent=5 // pred_check
        %p434 = pneg %p433
      $region66: #{tpu_custom_call.1} parent=5 // pred_check_branch
        %436 = sbr.rel (%p434) target = $region68
      $region67: #{tpu_custom_call.1} parent=5 // pred_region
        // Predicated region
        $region69: #{tpu_custom_call.1} parent=67 // pred_check
          %p437 = pneg %p48
        $region70: #{tpu_custom_call.1} parent=67 // pred_check_branch
          %439 = sbr.rel (%p437) target = $region72
        $region71: #{tpu_custom_call.1} parent=67 // pred_region
          %p440 = scmp.lt.s32.totalorder %s28, 1
          %s441 = scalar_select %p440, %s28, 1
          %s442 = smul.addr %s441, 8
          %s443 = scalar_lea.vmem %s0, %s442
        $region72: #{tpu_custom_call.1} parent=67 // pred_fallthru
          _
      $region68: #{tpu_custom_call.1} parent=5 // pred_fallthru
        _
      %p444 = scmp.le.s32.totalorder 1, %s28
      %p445 = scmp.lt.s32.totalorder %s28, 3
      %p446 = pnand %p444, %p445
      %p447 = pneg %p446
      // Predicated region
      $region73: #{tpu_custom_call.1} parent=5 // pred_check
        _
      $region74: #{tpu_custom_call.1} parent=5 // pred_check_branch
        %449 = sbr.rel (%p446) target = $region76
      $region75: #{tpu_custom_call.1} parent=5 // pred_region
        %s450 = ssub.s32 %s28, 1
        %p451 = scmp.lt.s32.totalorder %s33, 1
        %s452 = scalar_select %p451, %s33, 1
        %s453 = smul.addr %s452, 8
        %s454 = scalar_lea.vmem %s0, %s453
        %p455 = pneg %p54
        %p456 = pneg %p51
        %p457 = pneg %p75
        %p458 = pneg %p72
        %p459 = pneg %p96
        %p460 = pneg %p93
        %p461 = pneg %p117
        %p462 = pneg %p114
        %p463 = pneg %p138
        %p464 = pneg %p135
        %p465 = pneg %p159
        %p466 = pneg %p156
        %p467 = pneg %p180
        %p468 = pneg %p177
        %p469 = pneg %p201
        %p470 = pneg %p198
        %p471 = pneg %p222
        %p472 = pneg %p219
        %p473 = pneg %p243
        %p474 = pneg %p240
        %p475 = pneg %p264
        %p476 = pneg %p261
        %p477 = pneg %p285
        %p478 = pneg %p282
        %p479 = pneg %p306
        %p480 = pneg %p303
        %p481 = pneg %p327
        %p482 = pneg %p324
        %p483 = pneg %p353
        %p484 = pneg %p350
        %s485 = sand.u32 %s340, 1
        %s486 = scalar_lea.sflag [#allocation3], %s485
        %s487 = sand.u32 %s340, 1
        %s488 = smul.addr %s487, 8
        %s489 = scalar_lea.vmem [#allocation2], %s488
        %p490 = pneg %p379
        %p491 = pneg %p376
        %s492 = sand.u32 %s366, 1
        %s493 = scalar_lea.sflag [#allocation5], %s492
        %s494 = sand.u32 %s366, 1
        %s495 = smul.addr %s494, 32
        %s496 = scalar_lea.vmem [#allocation4], %s495
        %p497 = scmp.lt.s32.totalorder %s33, 1
        %s498 = scalar_select %p497, %s33, 1
        %s499 = smul.addr %s498, 8
        %s500 = scalar_lea.vmem %s0, %s499
        %v501 = vld [vmem:[%s500] sm:$0xff]
        %v502 = vld [vmem:[%s1] sm:$0xff]
        %v503 = vld [vmem:[%s2] sm:$0x1]
        %v504 = vld [vmem:[%s3] sm:$0x1]
        %vm505 = vcmask 261120
        %v506 = vsel %vm505, %v501, 0.0
        %507 = vadd.xlane.f32.xlu0 %v506
        %v508 = vpop.xlane.xlu0 %507
        %v509 = vrcp.pop 32.0
        %v510 = vmul.f32 %v508, %v509
        %v511 = vsub.f32 %v501, %v510
        %v512 = vmul.f32 %v511, %v511
        %v513 = vsel %vm505, %v512, 0.0
        %514 = vadd.xlane.f32.xlu0 %v513
        %v515 = vpop.xlane.xlu0 %514
        %v516 = vmul.f32 %v515, %v509
        %v517 = vadd.f32 %v516, 1e-05
        %v518 = vrsqrt.pop %v517
        %v519 = vmul.f32 %v511, %v518
        %v521 = vlaneseq
        %v522 = vshrl.u32 %v521, 7
        %v523 = vsub.s32 0, %v522
        %v524 = vrot.slane %v503, %v523
        %v526 = vmul.f32 %v519, %v524
        %v528 = vlaneseq
        %v529 = vshrl.u32 %v528, 7
        %v530 = vsub.s32 0, %v529
        %v531 = vrot.slane %v504, %v530
        %v533 = vadd.f32 %v526, %v531
        %v534 = vld [vmem:[%s4] sm:$0xff]
        %v535 = vld [vmem:[%s4 + $0x8] sm:$0xff]
        %v536 = vld [vmem:[%s4 + $0x10] sm:$0xff]
        %v537 = vld [vmem:[%s4 + $0x18] sm:$0xff]
        %v538 = vld [vmem:[%s5] sm:$0x1]
        %v540 = vlaneseq
        %v541 = vshrl.u32 %v540, 7
        %v542 = vsub.s32 0, %v541
        %v543 = vrot.slane %v538, %v542
        %v546 = vsel %vm505, %v533, 0
        %548 = vmatprep.subr.mxu0 0.0
        %549 = vmatpush1.msra.mxu0 0.0
        %550 = vmatprep.subr.mxu0 0.0
        %551 = vmatpush1.msra.mxu0 0.0
        %552 = vmatprep.subr.mxu0 0.0
        %553 = vmatpush1.msra.mxu0 0.0
        %554 = vmatprep.subr.mxu0 0.0
        %555 = vmatpush1.msra.mxu0 0.0
        %556 = vmatprep.subr.mxu0 0.0
        %557 = vmatpush1.msra.mxu0 0.0
        %558 = vmatprep.subr.mxu0 0.0
        %559 = vmatpush1.msra.mxu0 0.0
        %560 = vmatprep.subr.mxu0 0.0
        %561 = vmatpush1.msra.mxu0 0.0
        %562 = vmatprep.subr.mxu0 0.0
        %563 = vmatpush1.msra.mxu0 0.0
        %564 = vmatprep.subr.mxu0 0.0
        %565 = vmatpush1.msra.mxu0 0.0
        %566 = vmatprep.subr.mxu0 0.0
        %567 = vmatpush1.msra.mxu0 0.0
        %568 = vmatprep.subr.mxu0 0.0
        %569 = vmatpush1.msra.mxu0 0.0
        %570 = vmatprep.subr.mxu0 0.0
        %571 = vmatpush1.msra.mxu0 0.0
        %572 = vmatprep.subr.mxu0 0.0
        %573 = vmatpush1.msra.mxu0 %v537
        %574 = vmatprep.subr.mxu0 0.0
        %575 = vmatpush1.msra.mxu0 %v536
        %576 = vmatprep.subr.mxu0 0.0
        %577 = vmatpush1.msra.mxu0 %v535
        %578 = vmatprep.subr.mxu0 0.0
        %579 = vmatpush1.msra.mxu0 %v534
        %580 = vmatprep.subr.mxu0 0.0
        %581 = vmatpush2.msra.mxu0 0.0
        %582 = vmatprep.subr.mxu0 0.0
        %583 = vmatpush2.msra.mxu0 0.0
        %584 = vmatprep.subr.mxu0 0.0
        %585 = vmatpush2.msra.mxu0 0.0
        %586 = vmatprep.subr.mxu0 0.0
        %587 = vmatpush2.msra.mxu0 0.0
        %588 = vmatprep.subr.mxu0 0.0
        %589 = vmatpush2.msra.mxu0 0.0
        %590 = vmatprep.subr.mxu0 0.0
        %591 = vmatpush2.msra.mxu0 0.0
        %592 = vmatprep.subr.mxu0 0.0
        %593 = vmatpush2.msra.mxu0 0.0
        %594 = vmatprep.subr.mxu0 0.0
        %595 = vmatpush2.msra.mxu0 0.0
        %596 = vmatprep.subr.mxu0 0.0
        %597 = vmatpush2.msra.mxu0 0.0
        %598 = vmatprep.subr.mxu0 0.0
        %599 = vmatpush2.msra.mxu0 0.0
        %600 = vmatprep.subr.mxu0 0.0
        %601 = vmatpush2.msra.mxu0 0.0
        %602 = vmatprep.subr.mxu0 0.0
        %603 = vmatpush2.msra.mxu0 0.0
        %604 = vmatprep.subr.mxu0 0.0
        %605 = vmatpush2.msra.mxu0 0.0
        %606 = vmatprep.subr.mxu0 0.0
        %607 = vmatpush2.msra.mxu0 0.0
        %608 = vmatprep.subr.mxu0 0.0
        %609 = vmatpush2.msra.mxu0 0.0
        %610 = vmatprep.subr.mxu0 0.0
        %611 = vmatpush2.msra.mxu0 0.0
        %612 = vmatprep.mubr.f32.mxu0 0.0
        %613 = vmatmul.mubr.f32.gmra.mxu0 %v546
        %v614 = vpop.f32.mrf.mxu0
        %v615 = vadd.f32 %v543, %v614
        %v616 = vpop.f32.mrf.mxu0
        %617 = vdwg.mxu0
        %619 = vrot.lane.b32.xlu0 %v615, 96
        %v620 = vpop.permute.xlu0 %619
        %vm621 = vcmask 64512
        %v622 = vsel %vm621, %v615, 0
        %v624 = vsel %vm621, %v620, 0
        %626 = vmatprep.subr.mxu0 0.0
        %627 = vmatpush1.xpose.msra.mxu0 0.0
        %628 = vmatprep.subr.mxu0 0.0
        %629 = vmatpush1.xpose.msra.mxu0 0.0
        %630 = vmatprep.subr.mxu0 0.0
        %631 = vmatpush1.xpose.msra.mxu0 0.0
        %632 = vmatprep.subr.mxu0 0.0
        %633 = vmatpush1.xpose.msra.mxu0 0.0
        %634 = vmatprep.subr.mxu0 0.0
        %635 = vmatpush1.xpose.msra.mxu0 0.0
        %636 = vmatprep.subr.mxu0 0.0
        %637 = vmatpush1.xpose.msra.mxu0 0.0
        %638 = vmatprep.subr.mxu0 0.0
        %639 = vmatpush1.xpose.msra.mxu0 0.0
        %640 = vmatprep.subr.mxu0 0.0
        %641 = vmatpush1.xpose.msra.mxu0 0.0
        %642 = vmatprep.subr.mxu0 0.0
        %643 = vmatpush1.xpose.msra.mxu0 0.0
        %644 = vmatprep.subr.mxu0 0.0
        %645 = vmatpush1.xpose.msra.mxu0 0.0
        %646 = vmatprep.subr.mxu0 0.0
        %647 = vmatpush1.xpose.msra.mxu0 0.0
        %648 = vmatprep.subr.mxu0 0.0
        %649 = vmatpush1.xpose.msra.mxu0 0.0
        %650 = vmatprep.subr.mxu0 0.0
        %651 = vmatpush1.xpose.msra.mxu0 0.0
        %652 = vmatprep.subr.mxu0 0.0
        %653 = vmatpush1.xpose.msra.mxu0 0.0
        %654 = vmatprep.subr.mxu0 0.0
        %655 = vmatpush1.xpose.msra.mxu0 0.0
        %656 = vmatprep.subr.mxu0 0.0
        %657 = vmatpush1.xpose.msra.mxu0 %v624
        %658 = vmatprep.subr.mxu0 0.0
        %659 = vmatpush2.xpose.msra.mxu0 0.0
        %660 = vmatprep.subr.mxu0 0.0
        %661 = vmatpush2.xpose.msra.mxu0 0.0
        %662 = vmatprep.subr.mxu0 0.0
        %663 = vmatpush2.xpose.msra.mxu0 0.0
        %664 = vmatprep.subr.mxu0 0.0
        %665 = vmatpush2.xpose.msra.mxu0 0.0
        %666 = vmatprep.subr.mxu0 0.0
        %667 = vmatpush2.xpose.msra.mxu0 0.0
        %668 = vmatprep.subr.mxu0 0.0
        %669 = vmatpush2.xpose.msra.mxu0 0.0
        %670 = vmatprep.subr.mxu0 0.0
        %671 = vmatpush2.xpose.msra.mxu0 0.0
        %672 = vmatprep.subr.mxu0 0.0
        %673 = vmatpush2.xpose.msra.mxu0 0.0
        %674 = vmatprep.subr.mxu0 0.0
        %675 = vmatpush2.xpose.msra.mxu0 0.0
        %676 = vmatprep.subr.mxu0 0.0
        %677 = vmatpush2.xpose.msra.mxu0 0.0
        %678 = vmatprep.subr.mxu0 0.0
        %679 = vmatpush2.xpose.msra.mxu0 0.0
        %680 = vmatprep.subr.mxu0 0.0
        %681 = vmatpush2.xpose.msra.mxu0 0.0
        %682 = vmatprep.subr.mxu0 0.0
        %683 = vmatpush2.xpose.msra.mxu0 0.0
        %684 = vmatprep.subr.mxu0 0.0
        %685 = vmatpush2.xpose.msra.mxu0 0.0
        %686 = vmatprep.subr.mxu0 0.0
        %687 = vmatpush2.xpose.msra.mxu0 0.0
        %688 = vmatprep.subr.mxu0 0.0
        %689 = vmatpush2.xpose.msra.mxu0 0.0
        %690 = vmatprep.mubr.f32.mxu0 0.0
        %691 = vmatmul.mubr.f32.gmra.mxu0 %v622
        %v692 = vpop.f32.mrf.mxu0
        %v693 = vadd.f32 0.0, %v692
        %v694 = vpop.f32.mrf.mxu0
        %695 = vdwg.mxu0
        %v696 = vmul.f32 %v693, 0.35355338
        %v697 = vadd.f32 %v696, %v502
        %v698 = vsel %vm621, %v697, -inf
        %699 = vmax.xlane.f32.xlu0 %v698
        %v700 = vpop.xlane.xlu0 %699
        %v701 = vsub.f32 %v697, %v700
        %v702 = vmul.f32 %v701, 1.442695
        %v703 = vpow.pop %v702
        %v704 = vsel %vm621, %v703, 0.0
        %705 = vadd.xlane.f32.xlu0 %v704
        %v706 = vpop.xlane.xlu0 %705
        %v707 = vrcp.pop %v706
        %v708 = vmul.f32 %v703, %v707
        %709 = vst.msk [vmem:[%s496] sm:$0xff] %vm621, %v708
        %710 = vrot.lane.b32.xlu0 %v615, 64
        %v711 = vpop.permute.xlu0 %710
        %v714 = vsel %vm621, %v708, 0
        %716 = vmatprep.subr.mxu0 0.0
        %717 = vmatpush1.msra.mxu0 0.0
        %718 = vmatprep.subr.mxu0 0.0
        %719 = vmatpush1.msra.mxu0 0.0
        %720 = vmatprep.subr.mxu0 0.0
        %721 = vmatpush1.msra.mxu0 0.0
        %722 = vmatprep.subr.mxu0 0.0
        %723 = vmatpush1.msra.mxu0 0.0
        %724 = vmatprep.subr.mxu0 0.0
        %725 = vmatpush1.msra.mxu0 0.0
        %726 = vmatprep.subr.mxu0 0.0
        %727 = vmatpush1.msra.mxu0 0.0
        %728 = vmatprep.subr.mxu0 0.0
        %729 = vmatpush1.msra.mxu0 0.0
        %730 = vmatprep.subr.mxu0 0.0
        %731 = vmatpush1.msra.mxu0 0.0
        %732 = vmatprep.subr.mxu0 0.0
        %733 = vmatpush1.msra.mxu0 0.0
        %734 = vmatprep.subr.mxu0 0.0
        %735 = vmatpush1.msra.mxu0 0.0
        %736 = vmatprep.subr.mxu0 0.0
        %737 = vmatpush1.msra.mxu0 0.0
        %738 = vmatprep.subr.mxu0 0.0
        %739 = vmatpush1.msra.mxu0 0.0
        %740 = vmatprep.subr.mxu0 0.0
        %741 = vmatpush1.msra.mxu0 0.0
        %742 = vmatprep.subr.mxu0 0.0
        %743 = vmatpush1.msra.mxu0 0.0
        %744 = vmatprep.subr.mxu0 0.0
        %745 = vmatpush1.msra.mxu0 0.0
        %746 = vmatprep.subr.mxu0 0.0
        %747 = vmatpush1.msra.mxu0 %v711
        %748 = vmatprep.subr.mxu0 0.0
        %749 = vmatpush2.msra.mxu0 0.0
        %750 = vmatprep.subr.mxu0 0.0
        %751 = vmatpush2.msra.mxu0 0.0
        %752 = vmatprep.subr.mxu0 0.0
        %753 = vmatpush2.msra.mxu0 0.0
        %754 = vmatprep.subr.mxu0 0.0
        %755 = vmatpush2.msra.mxu0 0.0
        %756 = vmatprep.subr.mxu0 0.0
        %757 = vmatpush2.msra.mxu0 0.0
        %758 = vmatprep.subr.mxu0 0.0
        %759 = vmatpush2.msra.mxu0 0.0
        %760 = vmatprep.subr.mxu0 0.0
        %761 = vmatpush2.msra.mxu0 0.0
        %762 = vmatprep.subr.mxu0 0.0
        %763 = vmatpush2.msra.mxu0 0.0
        %764 = vmatprep.subr.mxu0 0.0
        %765 = vmatpush2.msra.mxu0 0.0
        %766 = vmatprep.subr.mxu0 0.0
        %767 = vmatpush2.msra.mxu0 0.0
        %768 = vmatprep.subr.mxu0 0.0
        %769 = vmatpush2.msra.mxu0 0.0
        %770 = vmatprep.subr.mxu0 0.0
        %771 = vmatpush2.msra.mxu0 0.0
        %772 = vmatprep.subr.mxu0 0.0
        %773 = vmatpush2.msra.mxu0 0.0
        %774 = vmatprep.subr.mxu0 0.0
        %775 = vmatpush2.msra.mxu0 0.0
        %776 = vmatprep.subr.mxu0 0.0
        %777 = vmatpush2.msra.mxu0 0.0
        %778 = vmatprep.subr.mxu0 0.0
        %779 = vmatpush2.msra.mxu0 0.0
        %780 = vmatprep.mubr.f32.mxu0 0.0
        %781 = vmatmul.mubr.f32.gmra.mxu0 %v714
        %v782 = vpop.f32.mrf.mxu0
        %v783 = vadd.f32 0.0, %v782
        %v784 = vpop.f32.mrf.mxu0
        %785 = vdwg.mxu0
        %786 = vrot.lane.b32.xlu0 %v615, 120
        %v787 = vpop.permute.xlu0 %786
        %788 = vrot.lane.b32.xlu0 %v615, 88
        %v789 = vpop.permute.xlu0 %788
        %v790 = vsel %vm621, %v787, 0
        %v792 = vsel %vm621, %v789, 0
        %794 = vmatprep.subr.mxu0 0.0
        %795 = vmatpush1.xpose.msra.mxu0 0.0
        %796 = vmatprep.subr.mxu0 0.0
        %797 = vmatpush1.xpose.msra.mxu0 0.0
        %798 = vmatprep.subr.mxu0 0.0
        %799 = vmatpush1.xpose.msra.mxu0 0.0
        %800 = vmatprep.subr.mxu0 0.0
        %801 = vmatpush1.xpose.msra.mxu0 0.0
        %802 = vmatprep.subr.mxu0 0.0
        %803 = vmatpush1.xpose.msra.mxu0 0.0
        %804 = vmatprep.subr.mxu0 0.0
        %805 = vmatpush1.xpose.msra.mxu0 0.0
        %806 = vmatprep.subr.mxu0 0.0
        %807 = vmatpush1.xpose.msra.mxu0 0.0
        %808 = vmatprep.subr.mxu0 0.0
        %809 = vmatpush1.xpose.msra.mxu0 0.0
        %810 = vmatprep.subr.mxu0 0.0
        %811 = vmatpush1.xpose.msra.mxu0 0.0
        %812 = vmatprep.subr.mxu0 0.0
        %813 = vmatpush1.xpose.msra.mxu0 0.0
        %814 = vmatprep.subr.mxu0 0.0
        %815 = vmatpush1.xpose.msra.mxu0 0.0
        %816 = vmatprep.subr.mxu0 0.0
        %817 = vmatpush1.xpose.msra.mxu0 0.0
        %818 = vmatprep.subr.mxu0 0.0
        %819 = vmatpush1.xpose.msra.mxu0 0.0
        %820 = vmatprep.subr.mxu0 0.0
        %821 = vmatpush1.xpose.msra.mxu0 0.0
        %822 = vmatprep.subr.mxu0 0.0
        %823 = vmatpush1.xpose.msra.mxu0 0.0
        %824 = vmatprep.subr.mxu0 0.0
        %825 = vmatpush1.xpose.msra.mxu0 %v792
        %826 = vmatprep.subr.mxu0 0.0
        %827 = vmatpush2.xpose.msra.mxu0 0.0
        %828 = vmatprep.subr.mxu0 0.0
        %829 = vmatpush2.xpose.msra.mxu0 0.0
        %830 = vmatprep.subr.mxu0 0.0
        %831 = vmatpush2.xpose.msra.mxu0 0.0
        %832 = vmatprep.subr.mxu0 0.0
        %833 = vmatpush2.xpose.msra.mxu0 0.0
        %834 = vmatprep.subr.mxu0 0.0
        %835 = vmatpush2.xpose.msra.mxu0 0.0
        %836 = vmatprep.subr.mxu0 0.0
        %837 = vmatpush2.xpose.msra.mxu0 0.0
        %838 = vmatprep.subr.mxu0 0.0
        %839 = vmatpush2.xpose.msra.mxu0 0.0
        %840 = vmatprep.subr.mxu0 0.0
        %841 = vmatpush2.xpose.msra.mxu0 0.0
        %842 = vmatprep.subr.mxu0 0.0
        %843 = vmatpush2.xpose.msra.mxu0 0.0
        %844 = vmatprep.subr.mxu0 0.0
        %845 = vmatpush2.xpose.msra.mxu0 0.0
        %846 = vmatprep.subr.mxu0 0.0
        %847 = vmatpush2.xpose.msra.mxu0 0.0
        %848 = vmatprep.subr.mxu0 0.0
        %849 = vmatpush2.xpose.msra.mxu0 0.0
        %850 = vmatprep.subr.mxu0 0.0
        %851 = vmatpush2.xpose.msra.mxu0 0.0
        %852 = vmatprep.subr.mxu0 0.0
        %853 = vmatpush2.xpose.msra.mxu0 0.0
        %854 = vmatprep.subr.mxu0 0.0
        %855 = vmatpush2.xpose.msra.mxu0 0.0
        %856 = vmatprep.subr.mxu0 0.0
        %857 = vmatpush2.xpose.msra.mxu0 0.0
        %858 = vmatprep.mubr.f32.mxu0 0.0
        %859 = vmatmul.mubr.f32.gmra.mxu0 %v790
        %v860 = vpop.f32.mrf.mxu0
        %v861 = vadd.f32 0.0, %v860
        %v862 = vpop.f32.mrf.mxu0
        %863 = vdwg.mxu0
        %v864 = vmul.f32 %v861, 0.35355338
        %v865 = vadd.f32 %v864, %v502
        %v866 = vsel %vm621, %v865, -inf
        %867 = vmax.xlane.f32.xlu0 %v866
        %v868 = vpop.xlane.xlu0 %867
        %v869 = vsub.f32 %v865, %v868
        %v870 = vmul.f32 %v869, 1.442695
        %v871 = vpow.pop %v870
        %v872 = vsel %vm621, %v871, 0.0
        %873 = vadd.xlane.f32.xlu0 %v872
        %v874 = vpop.xlane.xlu0 %873
        %v875 = vrcp.pop %v874
        %v876 = vmul.f32 %v871, %v875
        %s877 = scalar_lea.vmem %s496, 8 [#allocation4]
        %878 = vst.msk [vmem:[%s877] sm:$0xff] %vm621, %v876
        %879 = vrot.lane.b32.xlu0 %v615, 56
        %v880 = vpop.permute.xlu0 %879
        %v883 = vsel %vm621, %v876, 0
        %885 = vmatprep.subr.mxu0 0.0
        %886 = vmatpush1.msra.mxu0 0.0
        %887 = vmatprep.subr.mxu0 0.0
        %888 = vmatpush1.msra.mxu0 0.0
        %889 = vmatprep.subr.mxu0 0.0
        %890 = vmatpush1.msra.mxu0 0.0
        %891 = vmatprep.subr.mxu0 0.0
        %892 = vmatpush1.msra.mxu0 0.0
        %893 = vmatprep.subr.mxu0 0.0
        %894 = vmatpush1.msra.mxu0 0.0
        %895 = vmatprep.subr.mxu0 0.0
        %896 = vmatpush1.msra.mxu0 0.0
        %897 = vmatprep.subr.mxu0 0.0
        %898 = vmatpush1.msra.mxu0 0.0
        %899 = vmatprep.subr.mxu0 0.0
        %900 = vmatpush1.msra.mxu0 0.0
        %901 = vmatprep.subr.mxu0 0.0
        %902 = vmatpush1.msra.mxu0 0.0
        %903 = vmatprep.subr.mxu0 0.0
        %904 = vmatpush1.msra.mxu0 0.0
        %905 = vmatprep.subr.mxu0 0.0
        %906 = vmatpush1.msra.mxu0 0.0
        %907 = vmatprep.subr.mxu0 0.0
        %908 = vmatpush1.msra.mxu0 0.0
        %909 = vmatprep.subr.mxu0 0.0
        %910 = vmatpush1.msra.mxu0 0.0
        %911 = vmatprep.subr.mxu0 0.0
        %912 = vmatpush1.msra.mxu0 0.0
        %913 = vmatprep.subr.mxu0 0.0
        %914 = vmatpush1.msra.mxu0 0.0
        %915 = vmatprep.subr.mxu0 0.0
        %916 = vmatpush1.msra.mxu0 %v880
        %917 = vmatprep.subr.mxu0 0.0
        %918 = vmatpush2.msra.mxu0 0.0
        %919 = vmatprep.subr.mxu0 0.0
        %920 = vmatpush2.msra.mxu0 0.0
        %921 = vmatprep.subr.mxu0 0.0
        %922 = vmatpush2.msra.mxu0 0.0
        %923 = vmatprep.subr.mxu0 0.0
        %924 = vmatpush2.msra.mxu0 0.0
        %925 = vmatprep.subr.mxu0 0.0
        %926 = vmatpush2.msra.mxu0 0.0
        %927 = vmatprep.subr.mxu0 0.0
        %928 = vmatpush2.msra.mxu0 0.0
        %929 = vmatprep.subr.mxu0 0.0
        %930 = vmatpush2.msra.mxu0 0.0
        %931 = vmatprep.subr.mxu0 0.0
        %932 = vmatpush2.msra.mxu0 0.0
        %933 = vmatprep.subr.mxu0 0.0
        %934 = vmatpush2.msra.mxu0 0.0
        %935 = vmatprep.subr.mxu0 0.0
        %936 = vmatpush2.msra.mxu0 0.0
        %937 = vmatprep.subr.mxu0 0.0
        %938 = vmatpush2.msra.mxu0 0.0
        %939 = vmatprep.subr.mxu0 0.0
        %940 = vmatpush2.msra.mxu0 0.0
        %941 = vmatprep.subr.mxu0 0.0
        %942 = vmatpush2.msra.mxu0 0.0
        %943 = vmatprep.subr.mxu0 0.0
        %944 = vmatpush2.msra.mxu0 0.0
        %945 = vmatprep.subr.mxu0 0.0
        %946 = vmatpush2.msra.mxu0 0.0
        %947 = vmatprep.subr.mxu0 0.0
        %948 = vmatpush2.msra.mxu0 0.0
        %949 = vmatprep.mubr.f32.mxu0 0.0
        %950 = vmatmul.mubr.f32.gmra.mxu0 %v883
        %v951 = vpop.f32.mrf.mxu0
        %v952 = vadd.f32 0.0, %v951
        %v953 = vpop.f32.mrf.mxu0
        %954 = vdwg.mxu0
        %955 = vrot.lane.b32.xlu0 %v615, 112
        %v956 = vpop.permute.xlu0 %955
        %957 = vrot.lane.b32.xlu0 %v615, 80
        %v958 = vpop.permute.xlu0 %957
        %v959 = vsel %vm621, %v956, 0
        %v961 = vsel %vm621, %v958, 0
        %963 = vmatprep.subr.mxu0 0.0
        %964 = vmatpush1.xpose.msra.mxu0 0.0
        %965 = vmatprep.subr.mxu0 0.0
        %966 = vmatpush1.xpose.msra.mxu0 0.0
        %967 = vmatprep.subr.mxu0 0.0
        %968 = vmatpush1.xpose.msra.mxu0 0.0
        %969 = vmatprep.subr.mxu0 0.0
        %970 = vmatpush1.xpose.msra.mxu0 0.0
        %971 = vmatprep.subr.mxu0 0.0
        %972 = vmatpush1.xpose.msra.mxu0 0.0
        %973 = vmatprep.subr.mxu0 0.0
        %974 = vmatpush1.xpose.msra.mxu0 0.0
        %975 = vmatprep.subr.mxu0 0.0
        %976 = vmatpush1.xpose.msra.mxu0 0.0
        %977 = vmatprep.subr.mxu0 0.0
        %978 = vmatpush1.xpose.msra.mxu0 0.0
        %979 = vmatprep.subr.mxu0 0.0
        %980 = vmatpush1.xpose.msra.mxu0 0.0
        %981 = vmatprep.subr.mxu0 0.0
        %982 = vmatpush1.xpose.msra.mxu0 0.0
        %983 = vmatprep.subr.mxu0 0.0
        %984 = vmatpush1.xpose.msra.mxu0 0.0
        %985 = vmatprep.subr.mxu0 0.0
        %986 = vmatpush1.xpose.msra.mxu0 0.0
        %987 = vmatprep.subr.mxu0 0.0
        %988 = vmatpush1.xpose.msra.mxu0 0.0
        %989 = vmatprep.subr.mxu0 0.0
        %990 = vmatpush1.xpose.msra.mxu0 0.0
        %991 = vmatprep.subr.mxu0 0.0
        %992 = vmatpush1.xpose.msra.mxu0 0.0
        %993 = vmatprep.subr.mxu0 0.0
        %994 = vmatpush1.xpose.msra.mxu0 %v961
        %995 = vmatprep.subr.mxu0 0.0
        %996 = vmatpush2.xpose.msra.mxu0 0.0
        %997 = vmatprep.subr.mxu0 0.0
        %998 = vmatpush2.xpose.msra.mxu0 0.0
        %999 = vmatprep.subr.mxu0 0.0
        %1000 = vmatpush2.xpose.msra.mxu0 0.0
        %1001 = vmatprep.subr.mxu0 0.0
        %1002 = vmatpush2.xpose.msra.mxu0 0.0
        %1003 = vmatprep.subr.mxu0 0.0
        %1004 = vmatpush2.xpose.msra.mxu0 0.0
        %1005 = vmatprep.subr.mxu0 0.0
        %1006 = vmatpush2.xpose.msra.mxu0 0.0
        %1007 = vmatprep.subr.mxu0 0.0
        %1008 = vmatpush2.xpose.msra.mxu0 0.0
        %1009 = vmatprep.subr.mxu0 0.0
        %1010 = vmatpush2.xpose.msra.mxu0 0.0
        %1011 = vmatprep.subr.mxu0 0.0
        %1012 = vmatpush2.xpose.msra.mxu0 0.0
        %1013 = vmatprep.subr.mxu0 0.0
        %1014 = vmatpush2.xpose.msra.mxu0 0.0
        %1015 = vmatprep.subr.mxu0 0.0
        %1016 = vmatpush2.xpose.msra.mxu0 0.0
        %1017 = vmatprep.subr.mxu0 0.0
        %1018 = vmatpush2.xpose.msra.mxu0 0.0
        %1019 = vmatprep.subr.mxu0 0.0
        %1020 = vmatpush2.xpose.msra.mxu0 0.0
        %1021 = vmatprep.subr.mxu0 0.0
        %1022 = vmatpush2.xpose.msra.mxu0 0.0
        %1023 = vmatprep.subr.mxu0 0.0
        %1024 = vmatpush2.xpose.msra.mxu0 0.0
        %1025 = vmatprep.subr.mxu0 0.0
        %1026 = vmatpush2.xpose.msra.mxu0 0.0
        %1027 = vmatprep.mubr.f32.mxu0 0.0
        %1028 = vmatmul.mubr.f32.gmra.mxu0 %v959
        %v1029 = vpop.f32.mrf.mxu0
        %v1030 = vadd.f32 0.0, %v1029
        %v1031 = vpop.f32.mrf.mxu0
        %1032 = vdwg.mxu0
        %v1033 = vmul.f32 %v1030, 0.35355338
        %v1034 = vadd.f32 %v1033, %v502
        %v1035 = vsel %vm621, %v1034, -inf
        %1036 = vmax.xlane.f32.xlu0 %v1035
        %v1037 = vpop.xlane.xlu0 %1036
        %v1038 = vsub.f32 %v1034, %v1037
        %v1039 = vmul.f32 %v1038, 1.442695
        %v1040 = vpow.pop %v1039
        %v1041 = vsel %vm621, %v1040, 0.0
        %1042 = vadd.xlane.f32.xlu0 %v1041
        %v1043 = vpop.xlane.xlu0 %1042
        %v1044 = vrcp.pop %v1043
        %v1045 = vmul.f32 %v1040, %v1044
        %s1046 = scalar_lea.vmem %s496, 16 [#allocation4]
        %1047 = vst.msk [vmem:[%s1046] sm:$0xff] %vm621, %v1045
        %1048 = vrot.lane.b32.xlu0 %v615, 48
        %v1049 = vpop.permute.xlu0 %1048
        %v1052 = vsel %vm621, %v1045, 0
        %1054 = vmatprep.subr.mxu0 0.0
        %1055 = vmatpush1.msra.mxu0 0.0
        %1056 = vmatprep.subr.mxu0 0.0
        %1057 = vmatpush1.msra.mxu0 0.0
        %1058 = vmatprep.subr.mxu0 0.0
        %1059 = vmatpush1.msra.mxu0 0.0
        %1060 = vmatprep.subr.mxu0 0.0
        %1061 = vmatpush1.msra.mxu0 0.0
        %1062 = vmatprep.subr.mxu0 0.0
        %1063 = vmatpush1.msra.mxu0 0.0
        %1064 = vmatprep.subr.mxu0 0.0
        %1065 = vmatpush1.msra.mxu0 0.0
        %1066 = vmatprep.subr.mxu0 0.0
        %1067 = vmatpush1.msra.mxu0 0.0
        %1068 = vmatprep.subr.mxu0 0.0
        %1069 = vmatpush1.msra.mxu0 0.0
        %1070 = vmatprep.subr.mxu0 0.0
        %1071 = vmatpush1.msra.mxu0 0.0
        %1072 = vmatprep.subr.mxu0 0.0
        %1073 = vmatpush1.msra.mxu0 0.0
        %1074 = vmatprep.subr.mxu0 0.0
        %1075 = vmatpush1.msra.mxu0 0.0
        %1076 = vmatprep.subr.mxu0 0.0
        %1077 = vmatpush1.msra.mxu0 0.0
        %1078 = vmatprep.subr.mxu0 0.0
        %1079 = vmatpush1.msra.mxu0 0.0
        %1080 = vmatprep.subr.mxu0 0.0
        %1081 = vmatpush1.msra.mxu0 0.0
        %1082 = vmatprep.subr.mxu0 0.0
        %1083 = vmatpush1.msra.mxu0 0.0
        %1084 = vmatprep.subr.mxu0 0.0
        %1085 = vmatpush1.msra.mxu0 %v1049
        %1086 = vmatprep.subr.mxu0 0.0
        %1087 = vmatpush2.msra.mxu0 0.0
        %1088 = vmatprep.subr.mxu0 0.0
        %1089 = vmatpush2.msra.mxu0 0.0
        %1090 = vmatprep.subr.mxu0 0.0
        %1091 = vmatpush2.msra.mxu0 0.0
        %1092 = vmatprep.subr.mxu0 0.0
        %1093 = vmatpush2.msra.mxu0 0.0
        %1094 = vmatprep.subr.mxu0 0.0
        %1095 = vmatpush2.msra.mxu0 0.0
        %1096 = vmatprep.subr.mxu0 0.0
        %1097 = vmatpush2.msra.mxu0 0.0
        %1098 = vmatprep.subr.mxu0 0.0
        %1099 = vmatpush2.msra.mxu0 0.0
        %1100 = vmatprep.subr.mxu0 0.0
        %1101 = vmatpush2.msra.mxu0 0.0
        %1102 = vmatprep.subr.mxu0 0.0
        %1103 = vmatpush2.msra.mxu0 0.0
        %1104 = vmatprep.subr.mxu0 0.0
        %1105 = vmatpush2.msra.mxu0 0.0
        %1106 = vmatprep.subr.mxu0 0.0
        %1107 = vmatpush2.msra.mxu0 0.0
        %1108 = vmatprep.subr.mxu0 0.0
        %1109 = vmatpush2.msra.mxu0 0.0
        %1110 = vmatprep.subr.mxu0 0.0
        %1111 = vmatpush2.msra.mxu0 0.0
        %1112 = vmatprep.subr.mxu0 0.0
        %1113 = vmatpush2.msra.mxu0 0.0
        %1114 = vmatprep.subr.mxu0 0.0
        %1115 = vmatpush2.msra.mxu0 0.0
        %1116 = vmatprep.subr.mxu0 0.0
        %1117 = vmatpush2.msra.mxu0 0.0
        %1118 = vmatprep.mubr.f32.mxu0 0.0
        %1119 = vmatmul.mubr.f32.gmra.mxu0 %v1052
        %v1120 = vpop.f32.mrf.mxu0
        %v1121 = vadd.f32 0.0, %v1120
        %v1122 = vpop.f32.mrf.mxu0
        %1123 = vdwg.mxu0
        %1124 = vrot.lane.b32.xlu0 %v615, 104
        %v1125 = vpop.permute.xlu0 %1124
        %1126 = vrot.lane.b32.xlu0 %v615, 72
        %v1127 = vpop.permute.xlu0 %1126
        %v1128 = vsel %vm621, %v1125, 0
        %v1130 = vsel %vm621, %v1127, 0
        %1132 = vmatprep.subr.mxu0 0.0
        %1133 = vmatpush1.xpose.msra.mxu0 0.0
        %1134 = vmatprep.subr.mxu0 0.0
        %1135 = vmatpush1.xpose.msra.mxu0 0.0
        %1136 = vmatprep.subr.mxu0 0.0
        %1137 = vmatpush1.xpose.msra.mxu0 0.0
        %1138 = vmatprep.subr.mxu0 0.0
        %1139 = vmatpush1.xpose.msra.mxu0 0.0
        %1140 = vmatprep.subr.mxu0 0.0
        %1141 = vmatpush1.xpose.msra.mxu0 0.0
        %1142 = vmatprep.subr.mxu0 0.0
        %1143 = vmatpush1.xpose.msra.mxu0 0.0
        %1144 = vmatprep.subr.mxu0 0.0
        %1145 = vmatpush1.xpose.msra.mxu0 0.0
        %1146 = vmatprep.subr.mxu0 0.0
        %1147 = vmatpush1.xpose.msra.mxu0 0.0
        %1148 = vmatprep.subr.mxu0 0.0
        %1149 = vmatpush1.xpose.msra.mxu0 0.0
        %1150 = vmatprep.subr.mxu0 0.0
        %1151 = vmatpush1.xpose.msra.mxu0 0.0
        %1152 = vmatprep.subr.mxu0 0.0
        %1153 = vmatpush1.xpose.msra.mxu0 0.0
        %1154 = vmatprep.subr.mxu0 0.0
        %1155 = vmatpush1.xpose.msra.mxu0 0.0
        %1156 = vmatprep.subr.mxu0 0.0
        %1157 = vmatpush1.xpose.msra.mxu0 0.0
        %1158 = vmatprep.subr.mxu0 0.0
        %1159 = vmatpush1.xpose.msra.mxu0 0.0
        %1160 = vmatprep.subr.mxu0 0.0
        %1161 = vmatpush1.xpose.msra.mxu0 0.0
        %1162 = vmatprep.subr.mxu0 0.0
        %1163 = vmatpush1.xpose.msra.mxu0 %v1130
        %1164 = vmatprep.subr.mxu0 0.0
        %1165 = vmatpush2.xpose.msra.mxu0 0.0
        %1166 = vmatprep.subr.mxu0 0.0
        %1167 = vmatpush2.xpose.msra.mxu0 0.0
        %1168 = vmatprep.subr.mxu0 0.0
        %1169 = vmatpush2.xpose.msra.mxu0 0.0
        %1170 = vmatprep.subr.mxu0 0.0
        %1171 = vmatpush2.xpose.msra.mxu0 0.0
        %1172 = vmatprep.subr.mxu0 0.0
        %1173 = vmatpush2.xpose.msra.mxu0 0.0
        %1174 = vmatprep.subr.mxu0 0.0
        %1175 = vmatpush2.xpose.msra.mxu0 0.0
        %1176 = vmatprep.subr.mxu0 0.0
        %1177 = vmatpush2.xpose.msra.mxu0 0.0
        %1178 = vmatprep.subr.mxu0 0.0
        %1179 = vmatpush2.xpose.msra.mxu0 0.0
        %1180 = vmatprep.subr.mxu0 0.0
        %1181 = vmatpush2.xpose.msra.mxu0 0.0
        %1182 = vmatprep.subr.mxu0 0.0
        %1183 = vmatpush2.xpose.msra.mxu0 0.0
        %1184 = vmatprep.subr.mxu0 0.0
        %1185 = vmatpush2.xpose.msra.mxu0 0.0
        %1186 = vmatprep.subr.mxu0 0.0
        %1187 = vmatpush2.xpose.msra.mxu0 0.0
        %1188 = vmatprep.subr.mxu0 0.0
        %1189 = vmatpush2.xpose.msra.mxu0 0.0
        %1190 = vmatprep.subr.mxu0 0.0
        %1191 = vmatpush2.xpose.msra.mxu0 0.0
        %1192 = vmatprep.subr.mxu0 0.0
        %1193 = vmatpush2.xpose.msra.mxu0 0.0
        %1194 = vmatprep.subr.mxu0 0.0
        %1195 = vmatpush2.xpose.msra.mxu0 0.0
        %1196 = vmatprep.mubr.f32.mxu0 0.0
        %1197 = vmatmul.mubr.f32.gmra.mxu0 %v1128
        %v1198 = vpop.f32.mrf.mxu0
        %v1199 = vadd.f32 0.0, %v1198
        %v1200 = vpop.f32.mrf.mxu0
        %1201 = vdwg.mxu0
        %v1202 = vmul.f32 %v1199, 0.35355338
        %v1203 = vadd.f32 %v1202, %v502
        %v1204 = vsel %vm621, %v1203, -inf
        %1205 = vmax.xlane.f32.xlu0 %v1204
        %v1206 = vpop.xlane.xlu0 %1205
        %v1207 = vsub.f32 %v1203, %v1206
        %v1208 = vmul.f32 %v1207, 1.442695
        %v1209 = vpow.pop %v1208
        %v1210 = vsel %vm621, %v1209, 0.0
        %1211 = vadd.xlane.f32.xlu0 %v1210
        %v1212 = vpop.xlane.xlu0 %1211
        %v1213 = vrcp.pop %v1212
        %v1214 = vmul.f32 %v1209, %v1213
        %s1215 = scalar_lea.vmem %s496, 24 [#allocation4]
        %1216 = vst.msk [vmem:[%s1215] sm:$0xff] %vm621, %v1214
        %1217 = vrot.lane.b32.xlu0 %v615, 40
        %v1218 = vpop.permute.xlu0 %1217
        %v1221 = vsel %vm621, %v1214, 0
        %1223 = vmatprep.subr.mxu0 0.0
        %1224 = vmatpush1.msra.mxu0 0.0
        %1225 = vmatprep.subr.mxu0 0.0
        %1226 = vmatpush1.msra.mxu0 0.0
        %1227 = vmatprep.subr.mxu0 0.0
        %1228 = vmatpush1.msra.mxu0 0.0
        %1229 = vmatprep.subr.mxu0 0.0
        %1230 = vmatpush1.msra.mxu0 0.0
        %1231 = vmatprep.subr.mxu0 0.0
        %1232 = vmatpush1.msra.mxu0 0.0
        %1233 = vmatprep.subr.mxu0 0.0
        %1234 = vmatpush1.msra.mxu0 0.0
        %1235 = vmatprep.subr.mxu0 0.0
        %1236 = vmatpush1.msra.mxu0 0.0
        %1237 = vmatprep.subr.mxu0 0.0
        %1238 = vmatpush1.msra.mxu0 0.0
        %1239 = vmatprep.subr.mxu0 0.0
        %1240 = vmatpush1.msra.mxu0 0.0
        %1241 = vmatprep.subr.mxu0 0.0
        %1242 = vmatpush1.msra.mxu0 0.0
        %1243 = vmatprep.subr.mxu0 0.0
        %1244 = vmatpush1.msra.mxu0 0.0
        %1245 = vmatprep.subr.mxu0 0.0
        %1246 = vmatpush1.msra.mxu0 0.0
        %1247 = vmatprep.subr.mxu0 0.0
        %1248 = vmatpush1.msra.mxu0 0.0
        %1249 = vmatprep.subr.mxu0 0.0
        %1250 = vmatpush1.msra.mxu0 0.0
        %1251 = vmatprep.subr.mxu0 0.0
        %1252 = vmatpush1.msra.mxu0 0.0
        %1253 = vmatprep.subr.mxu0 0.0
        %1254 = vmatpush1.msra.mxu0 %v1218
        %1255 = vmatprep.subr.mxu0 0.0
        %1256 = vmatpush2.msra.mxu0 0.0
        %1257 = vmatprep.subr.mxu0 0.0
        %1258 = vmatpush2.msra.mxu0 0.0
        %1259 = vmatprep.subr.mxu0 0.0
        %1260 = vmatpush2.msra.mxu0 0.0
        %1261 = vmatprep.subr.mxu0 0.0
        %1262 = vmatpush2.msra.mxu0 0.0
        %1263 = vmatprep.subr.mxu0 0.0
        %1264 = vmatpush2.msra.mxu0 0.0
        %1265 = vmatprep.subr.mxu0 0.0
        %1266 = vmatpush2.msra.mxu0 0.0
        %1267 = vmatprep.subr.mxu0 0.0
        %1268 = vmatpush2.msra.mxu0 0.0
        %1269 = vmatprep.subr.mxu0 0.0
        %1270 = vmatpush2.msra.mxu0 0.0
        %1271 = vmatprep.subr.mxu0 0.0
        %1272 = vmatpush2.msra.mxu0 0.0
        %1273 = vmatprep.subr.mxu0 0.0
        %1274 = vmatpush2.msra.mxu0 0.0
        %1275 = vmatprep.subr.mxu0 0.0
        %1276 = vmatpush2.msra.mxu0 0.0
        %1277 = vmatprep.subr.mxu0 0.0
        %1278 = vmatpush2.msra.mxu0 0.0
        %1279 = vmatprep.subr.mxu0 0.0
        %1280 = vmatpush2.msra.mxu0 0.0
        %1281 = vmatprep.subr.mxu0 0.0
        %1282 = vmatpush2.msra.mxu0 0.0
        %1283 = vmatprep.subr.mxu0 0.0
        %1284 = vmatpush2.msra.mxu0 0.0
        %1285 = vmatprep.subr.mxu0 0.0
        %1286 = vmatpush2.msra.mxu0 0.0
        %1287 = vmatprep.mubr.f32.mxu0 0.0
        %1288 = vmatmul.mubr.f32.gmra.mxu0 %v1221
        %v1289 = vpop.f32.mrf.mxu0
        %v1290 = vadd.f32 0.0, %v1289
        %v1291 = vpop.f32.mrf.mxu0
        %1292 = vdwg.mxu0
        %1294 = vrot.lane.b32.xlu0 %v952, 8
        %v1295 = vpop.permute.xlu0 %1294
        %1298 = vrot.lane.b32.xlu0 %v1121, 16
        %v1299 = vpop.permute.xlu0 %1298
        %1302 = vrot.lane.b32.xlu0 %v1290, 24
        %v1303 = vpop.permute.xlu0 %1302
        %v1305 = vsel %vm621, %v783, %v1295
        %vm1306 = vcmask 130048
        %v1307 = vsel %vm1306, %v1305, %v1299
        %vm1308 = vcmask 195584
        %v1309 = vsel %vm1308, %v1307, %v1303
        %v1310 = vld [vmem:[%s6] sm:$0xff]
        %v1311 = vld [vmem:[%s6 + $0x8] sm:$0xff]
        %v1312 = vld [vmem:[%s6 + $0x10] sm:$0xff]
        %v1313 = vld [vmem:[%s6 + $0x18] sm:$0xff]
        %v1315 = vsel %vm505, %v1309, 0
        %1317 = vmatprep.subr.mxu0 0.0
        %1318 = vmatpush1.msra.mxu0 0.0
        %1319 = vmatprep.subr.mxu0 0.0
        %1320 = vmatpush1.msra.mxu0 0.0
        %1321 = vmatprep.subr.mxu0 0.0
        %1322 = vmatpush1.msra.mxu0 0.0
        %1323 = vmatprep.subr.mxu0 0.0
        %1324 = vmatpush1.msra.mxu0 0.0
        %1325 = vmatprep.subr.mxu0 0.0
        %1326 = vmatpush1.msra.mxu0 0.0
        %1327 = vmatprep.subr.mxu0 0.0
        %1328 = vmatpush1.msra.mxu0 0.0
        %1329 = vmatprep.subr.mxu0 0.0
        %1330 = vmatpush1.msra.mxu0 0.0
        %1331 = vmatprep.subr.mxu0 0.0
        %1332 = vmatpush1.msra.mxu0 0.0
        %1333 = vmatprep.subr.mxu0 0.0
        %1334 = vmatpush1.msra.mxu0 0.0
        %1335 = vmatprep.subr.mxu0 0.0
        %1336 = vmatpush1.msra.mxu0 0.0
        %1337 = vmatprep.subr.mxu0 0.0
        %1338 = vmatpush1.msra.mxu0 0.0
        %1339 = vmatprep.subr.mxu0 0.0
        %1340 = vmatpush1.msra.mxu0 0.0
        %1341 = vmatprep.subr.mxu0 0.0
        %1342 = vmatpush1.msra.mxu0 %v1313
        %1343 = vmatprep.subr.mxu0 0.0
        %1344 = vmatpush1.msra.mxu0 %v1312
        %1345 = vmatprep.subr.mxu0 0.0
        %1346 = vmatpush1.msra.mxu0 %v1311
        %1347 = vmatprep.subr.mxu0 0.0
        %1348 = vmatpush1.msra.mxu0 %v1310
        %1349 = vmatprep.subr.mxu0 0.0
        %1350 = vmatpush2.msra.mxu0 0.0
        %1351 = vmatprep.subr.mxu0 0.0
        %1352 = vmatpush2.msra.mxu0 0.0
        %1353 = vmatprep.subr.mxu0 0.0
        %1354 = vmatpush2.msra.mxu0 0.0
        %1355 = vmatprep.subr.mxu0 0.0
        %1356 = vmatpush2.msra.mxu0 0.0
        %1357 = vmatprep.subr.mxu0 0.0
        %1358 = vmatpush2.msra.mxu0 0.0
        %1359 = vmatprep.subr.mxu0 0.0
        %1360 = vmatpush2.msra.mxu0 0.0
        %1361 = vmatprep.subr.mxu0 0.0
        %1362 = vmatpush2.msra.mxu0 0.0
        %1363 = vmatprep.subr.mxu0 0.0
        %1364 = vmatpush2.msra.mxu0 0.0
        %1365 = vmatprep.subr.mxu0 0.0
        %1366 = vmatpush2.msra.mxu0 0.0
        %1367 = vmatprep.subr.mxu0 0.0
        %1368 = vmatpush2.msra.mxu0 0.0
        %1369 = vmatprep.subr.mxu0 0.0
        %1370 = vmatpush2.msra.mxu0 0.0
        %1371 = vmatprep.subr.mxu0 0.0
        %1372 = vmatpush2.msra.mxu0 0.0
        %1373 = vmatprep.subr.mxu0 0.0
        %1374 = vmatpush2.msra.mxu0 0.0
        %1375 = vmatprep.subr.mxu0 0.0
        %1376 = vmatpush2.msra.mxu0 0.0
        %1377 = vmatprep.subr.mxu0 0.0
        %1378 = vmatpush2.msra.mxu0 0.0
        %1379 = vmatprep.subr.mxu0 0.0
        %1380 = vmatpush2.msra.mxu0 0.0
        %1381 = vmatprep.mubr.f32.mxu0 0.0
        %1382 = vmatmul.mubr.f32.gmra.mxu0 %v1315
        %v1383 = vpop.f32.mrf.mxu0
        %v1384 = vadd.f32 0.0, %v1383
        %v1385 = vpop.f32.mrf.mxu0
        %1386 = vdwg.mxu0
        %v1387 = vadd.f32 %v501, %v1384
        %v1388 = vld [vmem:[%s7] sm:$0x1]
        %v1390 = vlaneseq
        %v1391 = vshrl.u32 %v1390, 7
        %v1392 = vsub.s32 0, %v1391
        %v1393 = vrot.slane %v1388, %v1392
        %v1395 = vadd.f32 %v1387, %v1393
        %v1396 = vld [vmem:[%s8] sm:$0x1]
        %v1397 = vld [vmem:[%s9] sm:$0x1]
        %v1398 = vsel %vm505, %v1395, 0.0
        %1399 = vadd.xlane.f32.xlu0 %v1398
        %v1400 = vpop.xlane.xlu0 %1399
        %v1401 = vmul.f32 %v1400, %v509
        %v1402 = vsub.f32 %v1395, %v1401
        %v1403 = vmul.f32 %v1402, %v1402
        %v1404 = vsel %vm505, %v1403, 0.0
        %1405 = vadd.xlane.f32.xlu0 %v1404
        %v1406 = vpop.xlane.xlu0 %1405
        %v1407 = vmul.f32 %v1406, %v509
        %v1408 = vadd.f32 %v1407, 1e-05
        %v1409 = vrsqrt.pop %v1408
        %v1410 = vmul.f32 %v1402, %v1409
        %v1412 = vlaneseq
        %v1413 = vshrl.u32 %v1412, 7
        %v1414 = vsub.s32 0, %v1413
        %v1415 = vrot.slane %v1396, %v1414
        %v1417 = vmul.f32 %v1410, %v1415
        %v1419 = vlaneseq
        %v1420 = vshrl.u32 %v1419, 7
        %v1421 = vsub.s32 0, %v1420
        %v1422 = vrot.slane %v1397, %v1421
        %v1424 = vadd.f32 %v1417, %v1422
        %v1425 = vld [vmem:[%s10] sm:$0xff]
        %v1426 = vld [vmem:[%s10 + $0x8] sm:$0xff]
        %v1427 = vld [vmem:[%s10 + $0x10] sm:$0xff]
        %v1428 = vld [vmem:[%s10 + $0x18] sm:$0xff]
        %v1429 = vld [vmem:[%s11] sm:$0x1]
        %v1431 = vlaneseq
        %v1432 = vshrl.u32 %v1431, 7
        %v1433 = vsub.s32 0, %v1432
        %v1434 = vrot.slane %v1429, %v1433
        %v1437 = vsel %vm505, %v1424, 0
        %1439 = vmatprep.subr.mxu0 0.0
        %1440 = vmatpush1.msra.mxu0 0.0
        %1441 = vmatprep.subr.mxu0 0.0
        %1442 = vmatpush1.msra.mxu0 0.0
        %1443 = vmatprep.subr.mxu0 0.0
        %1444 = vmatpush1.msra.mxu0 0.0
        %1445 = vmatprep.subr.mxu0 0.0
        %1446 = vmatpush1.msra.mxu0 0.0
        %1447 = vmatprep.subr.mxu0 0.0
        %1448 = vmatpush1.msra.mxu0 0.0
        %1449 = vmatprep.subr.mxu0 0.0
        %1450 = vmatpush1.msra.mxu0 0.0
        %1451 = vmatprep.subr.mxu0 0.0
        %1452 = vmatpush1.msra.mxu0 0.0
        %1453 = vmatprep.subr.mxu0 0.0
        %1454 = vmatpush1.msra.mxu0 0.0
        %1455 = vmatprep.subr.mxu0 0.0
        %1456 = vmatpush1.msra.mxu0 0.0
        %1457 = vmatprep.subr.mxu0 0.0
        %1458 = vmatpush1.msra.mxu0 0.0
        %1459 = vmatprep.subr.mxu0 0.0
        %1460 = vmatpush1.msra.mxu0 0.0
        %1461 = vmatprep.subr.mxu0 0.0
        %1462 = vmatpush1.msra.mxu0 0.0
        %1463 = vmatprep.subr.mxu0 0.0
        %1464 = vmatpush1.msra.mxu0 %v1428
        %1465 = vmatprep.subr.mxu0 0.0
        %1466 = vmatpush1.msra.mxu0 %v1427
        %1467 = vmatprep.subr.mxu0 0.0
        %1468 = vmatpush1.msra.mxu0 %v1426
        %1469 = vmatprep.subr.mxu0 0.0
        %1470 = vmatpush1.msra.mxu0 %v1425
        %1471 = vmatprep.subr.mxu0 0.0
        %1472 = vmatpush2.msra.mxu0 0.0
        %1473 = vmatprep.subr.mxu0 0.0
        %1474 = vmatpush2.msra.mxu0 0.0
        %1475 = vmatprep.subr.mxu0 0.0
        %1476 = vmatpush2.msra.mxu0 0.0
        %1477 = vmatprep.subr.mxu0 0.0
        %1478 = vmatpush2.msra.mxu0 0.0
        %1479 = vmatprep.subr.mxu0 0.0
        %1480 = vmatpush2.msra.mxu0 0.0
        %1481 = vmatprep.subr.mxu0 0.0
        %1482 = vmatpush2.msra.mxu0 0.0
        %1483 = vmatprep.subr.mxu0 0.0
        %1484 = vmatpush2.msra.mxu0 0.0
        %1485 = vmatprep.subr.mxu0 0.0
        %1486 = vmatpush2.msra.mxu0 0.0
        %1487 = vmatprep.subr.mxu0 0.0
        %1488 = vmatpush2.msra.mxu0 0.0
        %1489 = vmatprep.subr.mxu0 0.0
        %1490 = vmatpush2.msra.mxu0 0.0
        %1491 = vmatprep.subr.mxu0 0.0
        %1492 = vmatpush2.msra.mxu0 0.0
        %1493 = vmatprep.subr.mxu0 0.0
        %1494 = vmatpush2.msra.mxu0 0.0
        %1495 = vmatprep.subr.mxu0 0.0
        %1496 = vmatpush2.msra.mxu0 0.0
        %1497 = vmatprep.subr.mxu0 0.0
        %1498 = vmatpush2.msra.mxu0 0.0
        %1499 = vmatprep.subr.mxu0 0.0
        %1500 = vmatpush2.msra.mxu0 0.0
        %1501 = vmatprep.subr.mxu0 0.0
        %1502 = vmatpush2.msra.mxu0 0.0
        %1503 = vmatprep.mubr.f32.mxu0 0.0
        %1504 = vmatmul.mubr.f32.gmra.mxu0 %v1437
        %v1505 = vpop.f32.mrf.mxu0
        %v1506 = vadd.f32 %v1434, %v1505
        %v1507 = vpop.f32.mrf.mxu0
        %1508 = vdwg.mxu0
        %v1509 = vmax.f32 %v1506, 0.0
        %v1510 = vld [vmem:[%s12] sm:$0xff]
        %v1511 = vld [vmem:[%s12 + $0x8] sm:$0xff]
        %v1512 = vld [vmem:[%s12 + $0x10] sm:$0xff]
        %v1513 = vld [vmem:[%s12 + $0x18] sm:$0xff]
        %v1514 = vld [vmem:[%s12 + $0x20] sm:$0xff]
        %v1515 = vld [vmem:[%s12 + $0x28] sm:$0xff]
        %v1516 = vld [vmem:[%s12 + $0x30] sm:$0xff]
        %v1517 = vld [vmem:[%s12 + $0x38] sm:$0xff]
        %v1518 = vld [vmem:[%s12 + $0x40] sm:$0xff]
        %v1519 = vld [vmem:[%s12 + $0x48] sm:$0xff]
        %v1520 = vld [vmem:[%s12 + $0x50] sm:$0xff]
        %v1521 = vld [vmem:[%s12 + $0x58] sm:$0xff]
        %v1522 = vld [vmem:[%s12 + $0x60] sm:$0xff]
        %v1523 = vld [vmem:[%s12 + $0x68] sm:$0xff]
        %v1524 = vld [vmem:[%s12 + $0x70] sm:$0xff]
        %v1525 = vld [vmem:[%s12 + $0x78] sm:$0xff]
        %1526 = vmatprep.subr.mxu0 0.0
        %1527 = vmatpush1.msra.mxu0 %v1525
        %1528 = vmatprep.subr.mxu0 0.0
        %1529 = vmatpush1.msra.mxu0 %v1524
        %1530 = vmatprep.subr.mxu0 0.0
        %1531 = vmatpush1.msra.mxu0 %v1523
        %1532 = vmatprep.subr.mxu0 0.0
        %1533 = vmatpush1.msra.mxu0 %v1522
        %1534 = vmatprep.subr.mxu0 0.0
        %1535 = vmatpush1.msra.mxu0 %v1521
        %1536 = vmatprep.subr.mxu0 0.0
        %1537 = vmatpush1.msra.mxu0 %v1520
        %1538 = vmatprep.subr.mxu0 0.0
        %1539 = vmatpush1.msra.mxu0 %v1519
        %1540 = vmatprep.subr.mxu0 0.0
        %1541 = vmatpush1.msra.mxu0 %v1518
        %1542 = vmatprep.subr.mxu0 0.0
        %1543 = vmatpush1.msra.mxu0 %v1517
        %1544 = vmatprep.subr.mxu0 0.0
        %1545 = vmatpush1.msra.mxu0 %v1516
        %1546 = vmatprep.subr.mxu0 0.0
        %1547 = vmatpush1.msra.mxu0 %v1515
        %1548 = vmatprep.subr.mxu0 0.0
        %1549 = vmatpush1.msra.mxu0 %v1514
        %1550 = vmatprep.subr.mxu0 0.0
        %1551 = vmatpush1.msra.mxu0 %v1513
        %1552 = vmatprep.subr.mxu0 0.0
        %1553 = vmatpush1.msra.mxu0 %v1512
        %1554 = vmatprep.subr.mxu0 0.0
        %1555 = vmatpush1.msra.mxu0 %v1511
        %1556 = vmatprep.subr.mxu0 0.0
        %1557 = vmatpush1.msra.mxu0 %v1510
        %1558 = vmatprep.subr.mxu0 0.0
        %1559 = vmatpush2.msra.mxu0 0.0
        %1560 = vmatprep.subr.mxu0 0.0
        %1561 = vmatpush2.msra.mxu0 0.0
        %1562 = vmatprep.subr.mxu0 0.0
        %1563 = vmatpush2.msra.mxu0 0.0
        %1564 = vmatprep.subr.mxu0 0.0
        %1565 = vmatpush2.msra.mxu0 0.0
        %1566 = vmatprep.subr.mxu0 0.0
        %1567 = vmatpush2.msra.mxu0 0.0
        %1568 = vmatprep.subr.mxu0 0.0
        %1569 = vmatpush2.msra.mxu0 0.0
        %1570 = vmatprep.subr.mxu0 0.0
        %1571 = vmatpush2.msra.mxu0 0.0
        %1572 = vmatprep.subr.mxu0 0.0
        %1573 = vmatpush2.msra.mxu0 0.0
        %1574 = vmatprep.subr.mxu0 0.0
        %1575 = vmatpush2.msra.mxu0 0.0
        %1576 = vmatprep.subr.mxu0 0.0
        %1577 = vmatpush2.msra.mxu0 0.0
        %1578 = vmatprep.subr.mxu0 0.0
        %1579 = vmatpush2.msra.mxu0 0.0
        %1580 = vmatprep.subr.mxu0 0.0
        %1581 = vmatpush2.msra.mxu0 0.0
        %1582 = vmatprep.subr.mxu0 0.0
        %1583 = vmatpush2.msra.mxu0 0.0
        %1584 = vmatprep.subr.mxu0 0.0
        %1585 = vmatpush2.msra.mxu0 0.0
        %1586 = vmatprep.subr.mxu0 0.0
        %1587 = vmatpush2.msra.mxu0 0.0
        %1588 = vmatprep.subr.mxu0 0.0
        %1589 = vmatpush2.msra.mxu0 0.0
        %1590 = vmatprep.mubr.f32.mxu0 0.0
        %1591 = vmatmul.mubr.f32.gmra.mxu0 %v1509
        %v1592 = vpop.f32.mrf.mxu0
        %v1593 = vadd.f32 0.0, %v1592
        %v1594 = vpop.f32.mrf.mxu0
        %1595 = vdwg.mxu0
        %v1596 = vadd.f32 %v1395, %v1593
        %v1597 = vld [vmem:[%s13] sm:$0x1]
        %v1599 = vlaneseq
        %v1600 = vshrl.u32 %v1599, 7
        %v1601 = vsub.s32 0, %v1600
        %v1602 = vrot.slane %v1597, %v1601
        %v1604 = vadd.f32 %v1596, %v1602
        %1605 = vst.msk [vmem:[%s489] sm:$0xff] %vm505, %v1604
        %s1606 = sand.u32 %s340, 1
        %s1607 = scalar_lea.sflag [#allocation3], %s1606
        %s1608 = sand.u32 %s340, 1
        %s1609 = smul.addr %s1608, 8
        %s1610 = scalar_lea.vmem [#allocation2], %s1609
        %s1611 = sand.u32 %s366, 1
        %s1612 = scalar_lea.sflag [#allocation5], %s1611
        %s1613 = sand.u32 %s366, 1
        %s1614 = smul.addr %s1613, 32
        %s1615 = scalar_lea.vmem [#allocation4], %s1614
        // Predicated region
        $region77: #{tpu_custom_call.1} parent=75 // pred_check
          %p1616 = pneg %p350
        $region78: #{tpu_custom_call.1} parent=75 // pred_check_branch
          %1618 = sbr.rel (%p1616) target = $region80
        $region79: #{tpu_custom_call.1} parent=75 // pred_region
          %s1620 = ssub.s32 128, 128
          %1621 = vsyncadd %s1607, %s1620
          %s1622 = smul.addr %s33, 128
          %s1623 = scalar_lea.hbm %s14, %s1622
          %s1625 = sshll.u32 %s1610, 4
          %s1626 = int_to_ptr.vmem [resolvable:$true] %s1625
          %1628 = dma.vmem_to_hbm [thread:$0]  %s1626, 128, %s1623, %s1607
        $region80: #{tpu_custom_call.1} parent=75 // pred_fallthru
          _
        // Predicated region
        $region81: #{tpu_custom_call.1} parent=75 // pred_check
          %p1629 = pneg %p376
        $region82: #{tpu_custom_call.1} parent=75 // pred_check_branch
          %1631 = sbr.rel (%p1629) target = $region84
        $region83: #{tpu_custom_call.1} parent=75 // pred_region
          %s1633 = ssub.s32 512, 512
          %1634 = vsyncadd %s1612, %s1633
          %s1635 = smul.addr %s33, 4
          %s1636 = smul.addr %s1635, 128
          %s1637 = scalar_lea.hbm %s15, %s1636
          %s1638 = sshll.u32 %s1615, 4
          %s1639 = int_to_ptr.vmem [resolvable:$true] %s1638
          %1644 = dma.vmem_to_hbm [thread:$0]  %s1639, 512, %s1637, %s1612, 128, 128, 8
        $region84: #{tpu_custom_call.1} parent=75 // pred_fallthru
          _
      $region76: #{tpu_custom_call.1} parent=5 // pred_fallthru
        _
      %p1645 = scmp.le.s32.totalorder 2, %s28
      // Predicated region
      $region85: #{tpu_custom_call.1} parent=5 // pred_check
        %p1646 = pneg %p1645
      $region86: #{tpu_custom_call.1} parent=5 // pred_check_branch
        %1648 = sbr.rel (%p1646) target = $region88
      $region87: #{tpu_custom_call.1} parent=5 // pred_region
        %s1649 = ssub.s32 %s28, 2
        // Predicated region
        $region89: #{tpu_custom_call.1} parent=87 // pred_check
          %p1650 = pneg %p356
        $region90: #{tpu_custom_call.1} parent=87 // pred_check_branch
          %1652 = sbr.rel (%p1650) target = $region92
        $region91: #{tpu_custom_call.1} parent=87 // pred_region
          %s1653 = sand.u32 %s341, 1
          %s1654 = scalar_lea.sflag [#allocation3], %s1653
          %s1655 = sand.u32 %s341, 1
          %s1656 = smul.addr %s1655, 8
          %s1657 = scalar_lea.vmem [#allocation2], %s1656
          %1658 = dma.done %s1654, 128
        $region92: #{tpu_custom_call.1} parent=87 // pred_fallthru
          _
        // Predicated region
        $region93: #{tpu_custom_call.1} parent=87 // pred_check
          %p1659 = pneg %p382
        $region94: #{tpu_custom_call.1} parent=87 // pred_check_branch
          %1661 = sbr.rel (%p1659) target = $region96
        $region95: #{tpu_custom_call.1} parent=87 // pred_region
          %s1662 = sand.u32 %s367, 1
          %s1663 = scalar_lea.sflag [#allocation5], %s1662
          %s1664 = sand.u32 %s367, 1
          %s1665 = smul.addr %s1664, 32
          %s1666 = scalar_lea.vmem [#allocation4], %s1665
          %1667 = dma.done %s1663, 512
        $region96: #{tpu_custom_call.1} parent=87 // pred_fallthru
          _
      $region88: #{tpu_custom_call.1} parent=5 // pred_fallthru
        _
    $region6: #{tpu_custom_call.1} parent=1 // loop_footer
      %s32 = sadd.s32 1, %s28
    $region7: #{tpu_custom_call.1} parent=1 // loop_footer_branch
      %27 = sbr.rel target = $region3
    $region8: #{tpu_custom_call.1} parent=1 // loop_exit
      _
    %1668 = vsyncpa [#allocation3], 1
    %s1669 = scalar_lea.sflag [#allocation3], 1
    %1670 = vsyncpa %s1669, 1
    %1671 = vsyncpa [#allocation5], 1
    %s1672 = scalar_lea.sflag [#allocation5], 1
    %1673 = vsyncpa %s1672, 1

</llo_original>
